<compile_context>
chip_gen: v6e
topology: v6e:2x2x1
jax: 0.10.0
libtpu: 0.0.40
codegen_flags: <defaults>
</compile_context>

<pallas_src>
import functools

import numpy as np

import jax
import jax.numpy as jnp
from jax.experimental import pallas as pl
from jax.experimental.pallas import tpu as pltpu


# ------------------------------ Pallas kernel --------------------------------

def _resblock4_kernel(*refs, H, Ho, stride, has_sc, L1, L2):
    """Fused 4-block ResidualBlock stack for one batch element.

    Activations are lane-dense 2-D slabs: x_ref (H, L1=W*Cp), output
    (Ho, L2=Wo*Cout).  xp/pa/pb are row-padded VMEM scratch slabs (zero
    top/bottom halo row); column padding, kw taps, channel contraction and
    column stride are folded into the prebanded weight matrices, so every
    3x3 conv is a single im2col matmul (Ho, 3*L_in) x (3*L_in, L2).
    """
    if has_sc:
        (x_ref, w11, b11, w21, b21, ws, bs, wk, bk,
         o_ref, xp, pa, pb) = refs
    else:
        (x_ref, w11, b11, w21, b21, wk, bk,
         o_ref, xp, pa, pb) = refs
        ws = bs = None

    # Zero the halo rows every grid step (cheap; megacore-safe on v7x where a
    # core running only n>0 would otherwise see uninitialized scratch rows).
    z1 = jnp.zeros((1, L1), jnp.float32)
    z2 = jnp.zeros((1, L2), jnp.float32)
    xp[0:1, :] = z1
    xp[H + 1:H + 2, :] = z1
    pa[0:1, :] = z2
    pa[Ho + 1:Ho + 2, :] = z2
    pb[0:1, :] = z2
    pb[Ho + 1:Ho + 2, :] = z2

    # Stage the input into its row-padded slab: a single (H, L1) VMEM copy per
    # grid step, amortized over the 8 fused convs.
    xp[1:H + 1, :] = x_ref[...]

    def conv3x3(src, w, b, s):
        # im2col: concatenate the 3 kh-shifted row views along lanes, then one
        # MXU matmul against the prebanded (3*L_in, L2) bf16 weight.
        if s == 1:
            views = [src[kh:kh + Ho, :] for kh in range(3)]
        else:
            views = [src[pl.ds(kh, Ho, stride=s), :] for kh in range(3)]
        lhs = jnp.concatenate(views, axis=1).astype(jnp.bfloat16)
        return jnp.dot(lhs, w, preferred_element_type=jnp.float32) + b

    # ------------- block 1 (Cin -> Cout, stride, optional 1x1 shortcut) -----
    y1 = jnp.maximum(conv3x3(xp, w11[...], b11[...], stride), 0.0)
    pb[1:Ho + 1, :] = y1
    y2 = conv3x3(pb, w21[...], b21[...], 1)
    if has_sc:
        if stride == 1:
            xs = xp[1:H + 1, :]
        else:
            xs = xp[pl.ds(1, Ho, stride=stride), :]
        sc = (jnp.dot(xs.astype(jnp.bfloat16), ws[...],
                      preferred_element_type=jnp.float32) + bs[...])
    else:
        sc = xp[1:H + 1, :]          # identity: stride == 1, Cin == Cout
    pa[1:Ho + 1, :] = jnp.maximum(y2 + sc, 0.0)

    # ------------- blocks 2..4 (Cout -> Cout, stride 1, identity shortcut) --
    for k in range(3):
        y1 = jnp.maximum(conv3x3(pa, wk[k, 0], bk[k, 0], 1), 0.0)
        pb[1:Ho + 1, :] = y1
        y2 = conv3x3(pb, wk[k, 1], bk[k, 1], 1)
        out = jnp.maximum(y2 + pa[1:Ho + 1, :], 0.0)
        if k < 2:
            pa[1:Ho + 1, :] = out
        else:
            o_ref[...] = out.astype(o_ref.dtype)   # lane-dense (Ho, L2) store


# ------------------ one-time host-side weight preparation --------------------

def _band3(w, w_in, w_out, stride, cin_pad):
    """3x3 conv (padding=1, column stride) -> im2col-banded (3*w_in*cin_pad, w_out*cout)."""
    w = np.asarray(jax.device_get(w), np.float32)            # (3, 3, cin, cout)
    _, _, cin, cout = w.shape
    big = np.zeros((3, w_in * cin_pad, w_out * cout), np.float32)
    for kh in range(3):
        for kw in range(3):
            for j in range(w_out):
                col = j * stride + kw - 1
                if 0 <= col < w_in:
                    big[kh, col * cin_pad:col * cin_pad + cin,
                        j * cout:(j + 1) * cout] = w[kh, kw]
    return big.reshape(3 * w_in * cin_pad, w_out * cout)


def _band1(ws, w_in, w_out, stride, cin_pad):
    """Strided 1x1 conv -> block-banded (w_in*cin_pad, w_out*cout)."""
    ws = np.asarray(jax.device_get(ws), np.float32)          # (cin, cout)
    cin, cout = ws.shape
    big = np.zeros((w_in * cin_pad, w_out * cout), np.float32)
    for j in range(w_out):
        col = j * stride
        big[col * cin_pad:col * cin_pad + cin, j * cout:(j + 1) * cout] = ws
    return big


def _tile_bias(b, w_out):
    b = np.asarray(jax.device_get(b), np.float32)
    return np.tile(b.reshape(1, -1), (1, w_out))              # (1, w_out*cout)


def _pad_cin(W, cin, want_pad):
    """Smallest Cp >= cin with W*Cp a multiple of 128 (lane-dense input slab)."""
    if not want_pad:
        return cin
    for c in range(cin, cin + 129):
        if (W * c) % 128 == 0:
            return c
    return cin


def prepare_resblock4(params, strides, *, H, W, Cin):
    """Fold conv weights into banded bf16 matmul operands ONCE (outside jit)."""
    assert len(params) == 4 and len(strides) == 4
    s = int(strides[0])
    Cout = int(params[0]["w1"].shape[-1])
    has_sc = "ws" in params[0]
    assert has_sc or (s == 1 and Cin == Cout)
    for p, st in zip(params[1:], strides[1:]):
        assert st == 1 and int(p["w1"].shape[2]) == Cout and "ws" not in p, (
            "ResBlock4 blocks 2..4 must be identity-shortcut blocks")

    Cp = _pad_cin(W, Cin, has_sc)      # identity shortcut forbids channel pad
    Ho = (H - 1) // s + 1
    Wo = (W - 1) // s + 1

    p0 = params[0]
    weights = [
        jnp.asarray(_band3(p0["w1"], W, Wo, s, Cp), jnp.bfloat16),
        jnp.asarray(_tile_bias(p0["b1"], Wo)),
        jnp.asarray(_band3(p0["w2"], Wo, Wo, 1, Cout), jnp.bfloat16),
        jnp.asarray(_tile_bias(p0["b2"], Wo)),
    ]
    if has_sc:
        weights += [jnp.asarray(_band1(p0["ws"], W, Wo, s, Cp), jnp.bfloat16),
                    jnp.asarray(_tile_bias(p0["bs"], Wo))]
    wk = np.stack([np.stack([_band3(p["w1"], Wo, Wo, 1, Cout),
                             _band3(p["w2"], Wo, Wo, 1, Cout)])
                   for p in params[1:]])                       # (3,2,3*L2,L2)
    bk = np.stack([np.stack([_tile_bias(p["b1"], Wo),
                             _tile_bias(p["b2"], Wo)])
                   for p in params[1:]])                       # (3,2,1,L2)
    weights += [jnp.asarray(wk, jnp.bfloat16), jnp.asarray(bk)]

    # Banded weights are O(W*Wo*C^2): size-gate this formulation.  At larger
    # C/W switch back to a plain channel-contraction conv (v7x VMEM = 64 MiB).
    banded_bytes = sum(int(np.prod(a.shape)) * a.dtype.itemsize for a in weights)
    assert banded_bytes <= (8 << 20), "banded-conv path is for small blocks only"

    cfg = dict(H=H, W=W, Cin=Cin, Cp=Cp, Cout=Cout, stride=s, Ho=Ho, Wo=Wo,
               has_sc=has_sc)
    return tuple(weights), cfg


# ----------------------------------- forward ---------------------------------

def resblock4_fwd(x_nchw, weights, *, cfg):
    """x_nchw: (N, Cin, H, W) float32.  One fused Pallas call for all 4 blocks."""
    H, W, Cin, Cp = cfg["H"], cfg["W"], cfg["Cin"], cfg["Cp"]
    Cout, s, Ho, Wo = cfg["Cout"], cfg["stride"], cfg["Ho"], cfg["Wo"]
    has_sc = cfg["has_sc"]
    N = x_nchw.shape[0]
    L1, L2 = W * Cp, Wo * Cout

    # NCHW -> lane-dense (N, H, W*Cp) slab (channels zero-padded to Cp so the
    # input lane width is a multiple of 128; padded w rows are zero).
    x = jnp.transpose(x_nchw, (0, 2, 3, 1))
    if Cp > Cin:
        x = jnp.pad(x, ((0, 0), (0, 0), (0, 0), (0, Cp - Cin)))
    x2 = x.reshape(N, H, L1)

    kern = functools.partial(_resblock4_kernel, H=H, Ho=Ho, stride=s,
                             has_sc=has_sc, L1=L1, L2=L2)

    def _const_spec(a):
        return pl.BlockSpec(a.shape, lambda n, _nd=a.ndim: (0,) * _nd)

    in_specs = ([pl.BlockSpec((None, H, L1), lambda n: (n, 0, 0))]
                + [_const_spec(w) for w in weights])

    # advisory cost estimate (useful math FLOPs of the fused 4-block stack)
    flops = 2 * N * Ho * Wo * Cout * (9 * Cin + 9 * Cout + 6 * 9 * Cout
                                      + (Cin if has_sc else 0))
    bytes_accessed = (4 * x2.size + 4 * N * Ho * L2
                      + sum(int(np.prod(w.shape)) * w.dtype.itemsize
                            for w in weights))

    y2d = pl.pallas_call(
        kern,
        out_shape=jax.ShapeDtypeStruct((N, Ho, L2), x_nchw.dtype),
        grid=(N,),
        in_specs=in_specs,
        out_specs=pl.BlockSpec((None, Ho, L2), lambda n: (n, 0, 0)),
        scratch_shapes=[
            pltpu.VMEM((H + 2, L1), jnp.float32),    # row-padded block-1 input
            pltpu.VMEM((Ho + 2, L2), jnp.float32),   # ping: block input/output
            pltpu.VMEM((Ho + 2, L2), jnp.float32),   # pong: conv1 intermediate
        ],
        compiler_params=pltpu.CompilerParams(
            dimension_semantics=("parallel",)),      # batch across TCs (v7x)
        cost_estimate=pl.CostEstimate(flops=int(flops), transcendentals=0,
                                      bytes_accessed=int(bytes_accessed)),
    )(x2, *weights)

    return jnp.transpose(y2d.reshape(N, Ho, Wo, Cout), (0, 3, 1, 2))


# ----------------------- deterministic parameter init ------------------------

def init_params(key, in_channels, out_channels, stride):
    cfgs = [(in_channels, out_channels, stride),
            (out_channels, out_channels, 1),
            (out_channels, out_channels, 1),
            (out_channels, out_channels, 1)]
    params = []
    for (ci, co, s) in cfgs:
        key, k1, k2, k3, k4, k5, k6 = jax.random.split(key, 7)
        p = {
            "w1": jax.random.normal(k1, (3, 3, ci, co), jnp.float32)
                  / jnp.sqrt(9.0 * ci),
            "b1": 0.1 * jax.random.normal(k2, (co,), jnp.float32),
            "w2": jax.random.normal(k3, (3, 3, co, co), jnp.float32)
                  / jnp.sqrt(9.0 * co),
            "b2": 0.1 * jax.random.normal(k4, (co,), jnp.float32),
        }
        if s != 1 or ci != co:
            p["ws"] = (jax.random.normal(k5, (ci, co), jnp.float32)
                       / jnp.sqrt(float(ci)))
            p["bs"] = 0.1 * jax.random.normal(k6, (co,), jnp.float32)
        params.append(p)
    strides = [c[2] for c in cfgs]
    return params, strides


# ----------------------------- pure-JAX reference ----------------------------

def _conv_ref(x, w, b, stride, pad):
    y = jax.lax.conv_general_dilated(
        x, w, (stride, stride), pad,
        dimension_numbers=("NHWC", "HWIO", "NHWC"))
    return y + b.reshape(1, 1, 1, -1)


def resblock4_ref(x_nchw, params, strides):
    x = jnp.transpose(x_nchw, (0, 2, 3, 1))
    for p, s in zip(params, strides):
        y = jnp.maximum(_conv_ref(x, p["w1"], p["b1"], s, [(1, 1), (1, 1)]), 0.0)
        y = _conv_ref(y, p["w2"], p["b2"], 1, [(1, 1), (1, 1)])
        if "ws" in p:
            sc = _conv_ref(x, p["ws"].reshape(1, 1, *p["ws"].shape),
                           p["bs"], s, [(0, 0), (0, 0)])
        else:
            sc = x
        x = jnp.maximum(y + sc, 0.0)
    return jnp.transpose(x, (0, 3, 1, 2))


# ----------------------------------- main -------------------------------------

if __name__ == "__main__":
    key = jax.random.PRNGKey(0)
    k_x, k_p = jax.random.split(key)

    in_channels, out_channels, stride = 4, 8, 1
    N, H, W = 2, 16, 16
    x = jax.random.normal(k_x, (N, in_channels, H, W), jnp.float32)   # NCHW

    params, strides = init_params(k_p, in_channels, out_channels, stride)
    # One-time weight banding / bias tiling (hoisted out of the forward path).
    weights, cfg = prepare_resblock4(params, strides, H=H, W=W, Cin=in_channels)

    fwd = jax.jit(functools.partial(resblock4_fwd, cfg=cfg))
    out = jax.block_until_ready(fwd(x, weights))
    ref = jax.block_until_ready(resblock4_ref(x, params, strides))

    assert out.shape == ref.shape == (N, out_channels, H, W), out.shape
    # bf16 MXU operands (f32 accumulation) across 8 chained convs -> tolerance
    # loosened vs. the pure-f32 version.
    assert jnp.allclose(out, ref, rtol=5e-2, atol=5e-2), (
        float(jnp.max(jnp.abs(out - ref))))

    print("KERNEL_OK")
</pallas_src>

<mosaic_0001>
module attributes {stable_mosaic.version = 11 : i64} {
  func.func @_resblock4_kernel(%arg0: i32, %arg1: memref<1x16x128xf32, #tpu.memory_space<vmem>>, %arg2: memref<384x128xbf16, #tpu.memory_space<vmem>>, %arg3: memref<1x128xf32, #tpu.memory_space<vmem>>, %arg4: memref<384x128xbf16, #tpu.memory_space<vmem>>, %arg5: memref<1x128xf32, #tpu.memory_space<vmem>>, %arg6: memref<128x128xbf16, #tpu.memory_space<vmem>>, %arg7: memref<1x128xf32, #tpu.memory_space<vmem>>, %arg8: memref<3x2x384x128xbf16, #tpu.memory_space<vmem>>, %arg9: memref<3x2x1x128xf32, #tpu.memory_space<vmem>>, %arg10: memref<1x16x128xf32, #tpu.memory_space<vmem>>, %arg11: memref<18x128xf32, #tpu.memory_space<vmem>>, %arg12: memref<18x128xf32, #tpu.memory_space<vmem>>, %arg13: memref<18x128xf32, #tpu.memory_space<vmem>>) attributes {dimension_semantics = [#tpu.dimension_semantics<parallel>], iteration_bounds = array<i64: 2>, scalar_prefetch = 0 : i64, scratch_operands = 3 : i64, tpu.core_type = #tpu.core_type<tc>, window_params = [{transform_indices = @transform_0, window_bounds = array<i64: 1, 16, 128>}, {pipeline_mode = #tpu.pipeline_mode<synchronous>, transform_indices = @transform_1, window_bounds = array<i64: 384, 128>}, {pipeline_mode = #tpu.pipeline_mode<synchronous>, transform_indices = @transform_2, window_bounds = array<i64: 1, 128>}, {pipeline_mode = #tpu.pipeline_mode<synchronous>, transform_indices = @transform_3, window_bounds = array<i64: 384, 128>}, {pipeline_mode = #tpu.pipeline_mode<synchronous>, transform_indices = @transform_4, window_bounds = array<i64: 1, 128>}, {pipeline_mode = #tpu.pipeline_mode<synchronous>, transform_indices = @transform_5, window_bounds = array<i64: 128, 128>}, {pipeline_mode = #tpu.pipeline_mode<synchronous>, transform_indices = @transform_6, window_bounds = array<i64: 1, 128>}, {pipeline_mode = #tpu.pipeline_mode<synchronous>, transform_indices = @transform_7, window_bounds = array<i64: 3, 2, 384, 128>}, {pipeline_mode = #tpu.pipeline_mode<synchronous>, transform_indices = @transform_8, window_bounds = array<i64: 3, 2, 1, 128>}, {transform_indices = @transform_9, window_bounds = array<i64: 1, 16, 128>}]} {
    %cst = arith.constant 0.000000e+00 : f32
    %0 = vector.broadcast %cst : f32 to vector<1x128xf32>
    %cst_0 = arith.constant 0.000000e+00 : f32
    %1 = vector.broadcast %cst_0 : f32 to vector<1x128xf32>
    %c0 = arith.constant 0 : index
    %c0_1 = arith.constant 0 : index
    %2 = vector.load %arg11[%c0, %c0_1] : memref<18x128xf32, #tpu.memory_space<vmem>>, vector<1x128xf32>
    tpu.vector_store %arg11[%c0, %c0_1], %0 {strides = array<i32>} : memref<18x128xf32, #tpu.memory_space<vmem>>, vector<1x128xf32>,
    %c17 = arith.constant 17 : index
    %c0_2 = arith.constant 0 : index
    %3 = vector.load %arg11[%c17, %c0_2] : memref<18x128xf32, #tpu.memory_space<vmem>>, vector<1x128xf32>
    tpu.vector_store %arg11[%c17, %c0_2], %0 {strides = array<i32>} : memref<18x128xf32, #tpu.memory_space<vmem>>, vector<1x128xf32>,
    %c0_3 = arith.constant 0 : index
    %c0_4 = arith.constant 0 : index
    %4 = vector.load %arg12[%c0_3, %c0_4] : memref<18x128xf32, #tpu.memory_space<vmem>>, vector<1x128xf32>
    tpu.vector_store %arg12[%c0_3, %c0_4], %1 {strides = array<i32>} : memref<18x128xf32, #tpu.memory_space<vmem>>, vector<1x128xf32>,
    %c17_5 = arith.constant 17 : index
    %c0_6 = arith.constant 0 : index
    %5 = vector.load %arg12[%c17_5, %c0_6] : memref<18x128xf32, #tpu.memory_space<vmem>>, vector<1x128xf32>
    tpu.vector_store %arg12[%c17_5, %c0_6], %1 {strides = array<i32>} : memref<18x128xf32, #tpu.memory_space<vmem>>, vector<1x128xf32>,
    %c0_7 = arith.constant 0 : index
    %c0_8 = arith.constant 0 : index
    %6 = vector.load %arg13[%c0_7, %c0_8] : memref<18x128xf32, #tpu.memory_space<vmem>>, vector<1x128xf32>
    tpu.vector_store %arg13[%c0_7, %c0_8], %1 {strides = array<i32>} : memref<18x128xf32, #tpu.memory_space<vmem>>, vector<1x128xf32>,
    %c17_9 = arith.constant 17 : index
    %c0_10 = arith.constant 0 : index
    %7 = vector.load %arg13[%c17_9, %c0_10] : memref<18x128xf32, #tpu.memory_space<vmem>>, vector<1x128xf32>
    tpu.vector_store %arg13[%c17_9, %c0_10], %1 {strides = array<i32>} : memref<18x128xf32, #tpu.memory_space<vmem>>, vector<1x128xf32>,
    %c0_11 = arith.constant 0 : index
    %c0_12 = arith.constant 0 : index
    %c0_13 = arith.constant 0 : index
    %8 = vector.load %arg1[%c0_11, %c0_12, %c0_13] : memref<1x16x128xf32, #tpu.memory_space<vmem>>, vector<1x16x128xf32>
    %9 = vector.shape_cast %8 : vector<1x16x128xf32> to vector<16x128xf32>
    %c1 = arith.constant 1 : index
    %c0_14 = arith.constant 0 : index
    %10 = vector.load %arg11[%c1, %c0_14] : memref<18x128xf32, #tpu.memory_space<vmem>>, vector<16x128xf32>
    tpu.vector_store %arg11[%c1, %c0_14], %9 {strides = array<i32>} : memref<18x128xf32, #tpu.memory_space<vmem>>, vector<16x128xf32>,
    %c0_15 = arith.constant 0 : index
    %c0_16 = arith.constant 0 : index
    %11 = vector.load %arg2[%c0_15, %c0_16] : memref<384x128xbf16, #tpu.memory_space<vmem>>, vector<384x128xbf16>
    %c0_17 = arith.constant 0 : index
    %c0_18 = arith.constant 0 : index
    %12 = vector.load %arg3[%c0_17, %c0_18] : memref<1x128xf32, #tpu.memory_space<vmem>>, vector<1x128xf32>
    %c0_19 = arith.constant 0 : index
    %c0_20 = arith.constant 0 : index
    %13 = vector.load %arg11[%c0_19, %c0_20] : memref<18x128xf32, #tpu.memory_space<vmem>>, vector<16x128xf32>
    %c1_21 = arith.constant 1 : index
    %c0_22 = arith.constant 0 : index
    %14 = vector.load %arg11[%c1_21, %c0_22] : memref<18x128xf32, #tpu.memory_space<vmem>>, vector<16x128xf32>
    %c2 = arith.constant 2 : index
    %c0_23 = arith.constant 0 : index
    %15 = vector.load %arg11[%c2, %c0_23] : memref<18x128xf32, #tpu.memory_space<vmem>>, vector<16x128xf32>
    %16 = tpu.concatenate %13, %14, %15 in 1 : vector<16x128xf32>, vector<16x128xf32>, vector<16x128xf32> -> vector<16x384xf32>
    %17 = arith.truncf %16 : vector<16x384xf32> to vector<16x384xbf16>
    %cst_24 = arith.constant dense<0.000000e+00> : vector<16x128xf32>
    %18 = tpu.matmul %17, %11, %cst_24 {dimension_numbers = #tpu.dot_dimension_numbers<[1], [0], [0], [1], [0, 0, 1, 1], [], []>} : vector<16x384xbf16>, vector<384x128xbf16>, vector<16x128xf32> -> vector<16x128xf32>
    %19 = vector.broadcast %12 : vector<1x128xf32> to vector<16x128xf32>
    %20 = arith.addf %18, %19 : vector<16x128xf32>
    %cst_25 = arith.constant 0.000000e+00 : f32
    %21 = vector.broadcast %cst_25 : f32 to vector<16x128xf32>
    %22 = arith.maximumf %20, %21 : vector<16x128xf32>
    %c1_26 = arith.constant 1 : index
    %c0_27 = arith.constant 0 : index
    %23 = vector.load %arg13[%c1_26, %c0_27] : memref<18x128xf32, #tpu.memory_space<vmem>>, vector<16x128xf32>
    tpu.vector_store %arg13[%c1_26, %c0_27], %22 {strides = array<i32>} : memref<18x128xf32, #tpu.memory_space<vmem>>, vector<16x128xf32>,
    %c0_28 = arith.constant 0 : index
    %c0_29 = arith.constant 0 : index
    %24 = vector.load %arg4[%c0_28, %c0_29] : memref<384x128xbf16, #tpu.memory_space<vmem>>, vector<384x128xbf16>
    %c0_30 = arith.constant 0 : index
    %c0_31 = arith.constant 0 : index
    %25 = vector.load %arg5[%c0_30, %c0_31] : memref<1x128xf32, #tpu.memory_space<vmem>>, vector<1x128xf32>
    %c0_32 = arith.constant 0 : index
    %c0_33 = arith.constant 0 : index
    %26 = vector.load %arg13[%c0_32, %c0_33] : memref<18x128xf32, #tpu.memory_space<vmem>>, vector<16x128xf32>
    %c1_34 = arith.constant 1 : index
    %c0_35 = arith.constant 0 : index
    %27 = vector.load %arg13[%c1_34, %c0_35] : memref<18x128xf32, #tpu.memory_space<vmem>>, vector<16x128xf32>
    %c2_36 = arith.constant 2 : index
    %c0_37 = arith.constant 0 : index
    %28 = vector.load %arg13[%c2_36, %c0_37] : memref<18x128xf32, #tpu.memory_space<vmem>>, vector<16x128xf32>
    %29 = tpu.concatenate %26, %27, %28 in 1 : vector<16x128xf32>, vector<16x128xf32>, vector<16x128xf32> -> vector<16x384xf32>
    %30 = arith.truncf %29 : vector<16x384xf32> to vector<16x384xbf16>
    %cst_38 = arith.constant dense<0.000000e+00> : vector<16x128xf32>
    %31 = tpu.matmul %30, %24, %cst_38 {dimension_numbers = #tpu.dot_dimension_numbers<[1], [0], [0], [1], [0, 0, 1, 1], [], []>} : vector<16x384xbf16>, vector<384x128xbf16>, vector<16x128xf32> -> vector<16x128xf32>
    %32 = vector.broadcast %25 : vector<1x128xf32> to vector<16x128xf32>
    %33 = arith.addf %31, %32 : vector<16x128xf32>
    %c1_39 = arith.constant 1 : index
    %c0_40 = arith.constant 0 : index
    %34 = vector.load %arg11[%c1_39, %c0_40] : memref<18x128xf32, #tpu.memory_space<vmem>>, vector<16x128xf32>
    %35 = arith.truncf %34 : vector<16x128xf32> to vector<16x128xbf16>
    %c0_41 = arith.constant 0 : index
    %c0_42 = arith.constant 0 : index
    %36 = vector.load %arg6[%c0_41, %c0_42] : memref<128x128xbf16, #tpu.memory_space<vmem>>, vector<128x128xbf16>
    %cst_43 = arith.constant dense<0.000000e+00> : vector<16x128xf32>
    %37 = tpu.matmul %35, %36, %cst_43 {dimension_numbers = #tpu.dot_dimension_numbers<[1], [0], [0], [1], [0, 0, 1, 1], [], []>} : vector<16x128xbf16>, vector<128x128xbf16>, vector<16x128xf32> -> vector<16x128xf32>
    %c0_44 = arith.constant 0 : index
    %c0_45 = arith.constant 0 : index
    %38 = vector.load %arg7[%c0_44, %c0_45] : memref<1x128xf32, #tpu.memory_space<vmem>>, vector<1x128xf32>
    %39 = vector.broadcast %38 : vector<1x128xf32> to vector<16x128xf32>
    %40 = arith.addf %37, %39 : vector<16x128xf32>
    %41 = arith.addf %33, %40 : vector<16x128xf32>
    %cst_46 = arith.constant 0.000000e+00 : f32
    %42 = vector.broadcast %cst_46 : f32 to vector<16x128xf32>
    %43 = arith.maximumf %41, %42 : vector<16x128xf32>
    %c1_47 = arith.constant 1 : index
    %c0_48 = arith.constant 0 : index
    %44 = vector.load %arg12[%c1_47, %c0_48] : memref<18x128xf32, #tpu.memory_space<vmem>>, vector<16x128xf32>
    tpu.vector_store %arg12[%c1_47, %c0_48], %43 {strides = array<i32>} : memref<18x128xf32, #tpu.memory_space<vmem>>, vector<16x128xf32>,
    %c0_49 = arith.constant 0 : index
    %c0_50 = arith.constant 0 : index
    %c0_51 = arith.constant 0 : index
    %c0_52 = arith.constant 0 : index
    %45 = vector.load %arg8[%c0_49, %c0_50, %c0_51, %c0_52] : memref<3x2x384x128xbf16, #tpu.memory_space<vmem>>, vector<1x1x384x128xbf16>
    %46 = vector.shape_cast %45 : vector<1x1x384x128xbf16> to vector<384x128xbf16>
    %c0_53 = arith.constant 0 : index
    %c0_54 = arith.constant 0 : index
    %c0_55 = arith.constant 0 : index
    %c0_56 = arith.constant 0 : index
    %47 = vector.load %arg9[%c0_53, %c0_54, %c0_55, %c0_56] : memref<3x2x1x128xf32, #tpu.memory_space<vmem>>, vector<1x1x1x128xf32>
    %48 = vector.shape_cast %47 : vector<1x1x1x128xf32> to vector<1x128xf32>
    %c0_57 = arith.constant 0 : index
    %c0_58 = arith.constant 0 : index
    %49 = vector.load %arg12[%c0_57, %c0_58] : memref<18x128xf32, #tpu.memory_space<vmem>>, vector<16x128xf32>
    %c1_59 = arith.constant 1 : index
    %c0_60 = arith.constant 0 : index
    %50 = vector.load %arg12[%c1_59, %c0_60] : memref<18x128xf32, #tpu.memory_space<vmem>>, vector<16x128xf32>
    %c2_61 = arith.constant 2 : index
    %c0_62 = arith.constant 0 : index
    %51 = vector.load %arg12[%c2_61, %c0_62] : memref<18x128xf32, #tpu.memory_space<vmem>>, vector<16x128xf32>
    %52 = tpu.concatenate %49, %50, %51 in 1 : vector<16x128xf32>, vector<16x128xf32>, vector<16x128xf32> -> vector<16x384xf32>
    %53 = arith.truncf %52 : vector<16x384xf32> to vector<16x384xbf16>
    %cst_63 = arith.constant dense<0.000000e+00> : vector<16x128xf32>
    %54 = tpu.matmul %53, %46, %cst_63 {dimension_numbers = #tpu.dot_dimension_numbers<[1], [0], [0], [1], [0, 0, 1, 1], [], []>} : vector<16x384xbf16>, vector<384x128xbf16>, vector<16x128xf32> -> vector<16x128xf32>
    %55 = vector.broadcast %48 : vector<1x128xf32> to vector<16x128xf32>
    %56 = arith.addf %54, %55 : vector<16x128xf32>
    %cst_64 = arith.constant 0.000000e+00 : f32
    %57 = vector.broadcast %cst_64 : f32 to vector<16x128xf32>
    %58 = arith.maximumf %56, %57 : vector<16x128xf32>
    %c1_65 = arith.constant 1 : index
    %c0_66 = arith.constant 0 : index
    %59 = vector.load %arg13[%c1_65, %c0_66] : memref<18x128xf32, #tpu.memory_space<vmem>>, vector<16x128xf32>
    tpu.vector_store %arg13[%c1_65, %c0_66], %58 {strides = array<i32>} : memref<18x128xf32, #tpu.memory_space<vmem>>, vector<16x128xf32>,
    %c0_67 = arith.constant 0 : index
    %c1_68 = arith.constant 1 : index
    %c0_69 = arith.constant 0 : index
    %c0_70 = arith.constant 0 : index
    %60 = vector.load %arg8[%c0_67, %c1_68, %c0_69, %c0_70] : memref<3x2x384x128xbf16, #tpu.memory_space<vmem>>, vector<1x1x384x128xbf16>
    %61 = vector.shape_cast %60 : vector<1x1x384x128xbf16> to vector<384x128xbf16>
    %c0_71 = arith.constant 0 : index
    %c1_72 = arith.constant 1 : index
    %c0_73 = arith.constant 0 : index
    %c0_74 = arith.constant 0 : index
    %62 = vector.load %arg9[%c0_71, %c1_72, %c0_73, %c0_74] : memref<3x2x1x128xf32, #tpu.memory_space<vmem>>, vector<1x1x1x128xf32>
    %63 = vector.shape_cast %62 : vector<1x1x1x128xf32> to vector<1x128xf32>
    %c0_75 = arith.constant 0 : index
    %c0_76 = arith.constant 0 : index
    %64 = vector.load %arg13[%c0_75, %c0_76] : memref<18x128xf32, #tpu.memory_space<vmem>>, vector<16x128xf32>
    %c1_77 = arith.constant 1 : index
    %c0_78 = arith.constant 0 : index
    %65 = vector.load %arg13[%c1_77, %c0_78] : memref<18x128xf32, #tpu.memory_space<vmem>>, vector<16x128xf32>
    %c2_79 = arith.constant 2 : index
    %c0_80 = arith.constant 0 : index
    %66 = vector.load %arg13[%c2_79, %c0_80] : memref<18x128xf32, #tpu.memory_space<vmem>>, vector<16x128xf32>
    %67 = tpu.concatenate %64, %65, %66 in 1 : vector<16x128xf32>, vector<16x128xf32>, vector<16x128xf32> -> vector<16x384xf32>
    %68 = arith.truncf %67 : vector<16x384xf32> to vector<16x384xbf16>
    %cst_81 = arith.constant dense<0.000000e+00> : vector<16x128xf32>
    %69 = tpu.matmul %68, %61, %cst_81 {dimension_numbers = #tpu.dot_dimension_numbers<[1], [0], [0], [1], [0, 0, 1, 1], [], []>} : vector<16x384xbf16>, vector<384x128xbf16>, vector<16x128xf32> -> vector<16x128xf32>
    %70 = vector.broadcast %63 : vector<1x128xf32> to vector<16x128xf32>
    %71 = arith.addf %69, %70 : vector<16x128xf32>
    %c1_82 = arith.constant 1 : index
    %c0_83 = arith.constant 0 : index
    %72 = vector.load %arg12[%c1_82, %c0_83] : memref<18x128xf32, #tpu.memory_space<vmem>>, vector<16x128xf32>
    %73 = arith.addf %71, %72 : vector<16x128xf32>
    %cst_84 = arith.constant 0.000000e+00 : f32
    %74 = vector.broadcast %cst_84 : f32 to vector<16x128xf32>
    %75 = arith.maximumf %73, %74 : vector<16x128xf32>
    %c1_85 = arith.constant 1 : index
    %c0_86 = arith.constant 0 : index
    %76 = vector.load %arg12[%c1_85, %c0_86] : memref<18x128xf32, #tpu.memory_space<vmem>>, vector<16x128xf32>
    tpu.vector_store %arg12[%c1_85, %c0_86], %75 {strides = array<i32>} : memref<18x128xf32, #tpu.memory_space<vmem>>, vector<16x128xf32>,
    %c1_87 = arith.constant 1 : index
    %c0_88 = arith.constant 0 : index
    %c0_89 = arith.constant 0 : index
    %c0_90 = arith.constant 0 : index
    %77 = vector.load %arg8[%c1_87, %c0_88, %c0_89, %c0_90] : memref<3x2x384x128xbf16, #tpu.memory_space<vmem>>, vector<1x1x384x128xbf16>
    %78 = vector.shape_cast %77 : vector<1x1x384x128xbf16> to vector<384x128xbf16>
    %c1_91 = arith.constant 1 : index
    %c0_92 = arith.constant 0 : index
    %c0_93 = arith.constant 0 : index
    %c0_94 = arith.constant 0 : index
    %79 = vector.load %arg9[%c1_91, %c0_92, %c0_93, %c0_94] : memref<3x2x1x128xf32, #tpu.memory_space<vmem>>, vector<1x1x1x128xf32>
    %80 = vector.shape_cast %79 : vector<1x1x1x128xf32> to vector<1x128xf32>
    %c0_95 = arith.constant 0 : index
    %c0_96 = arith.constant 0 : index
    %81 = vector.load %arg12[%c0_95, %c0_96] : memref<18x128xf32, #tpu.memory_space<vmem>>, vector<16x128xf32>
    %c1_97 = arith.constant 1 : index
    %c0_98 = arith.constant 0 : index
    %82 = vector.load %arg12[%c1_97, %c0_98] : memref<18x128xf32, #tpu.memory_space<vmem>>, vector<16x128xf32>
    %c2_99 = arith.constant 2 : index
    %c0_100 = arith.constant 0 : index
    %83 = vector.load %arg12[%c2_99, %c0_100] : memref<18x128xf32, #tpu.memory_space<vmem>>, vector<16x128xf32>
    %84 = tpu.concatenate %81, %82, %83 in 1 : vector<16x128xf32>, vector<16x128xf32>, vector<16x128xf32> -> vector<16x384xf32>
    %85 = arith.truncf %84 : vector<16x384xf32> to vector<16x384xbf16>
    %cst_101 = arith.constant dense<0.000000e+00> : vector<16x128xf32>
    %86 = tpu.matmul %85, %78, %cst_101 {dimension_numbers = #tpu.dot_dimension_numbers<[1], [0], [0], [1], [0, 0, 1, 1], [], []>} : vector<16x384xbf16>, vector<384x128xbf16>, vector<16x128xf32> -> vector<16x128xf32>
    %87 = vector.broadcast %80 : vector<1x128xf32> to vector<16x128xf32>
    %88 = arith.addf %86, %87 : vector<16x128xf32>
    %cst_102 = arith.constant 0.000000e+00 : f32
    %89 = vector.broadcast %cst_102 : f32 to vector<16x128xf32>
    %90 = arith.maximumf %88, %89 : vector<16x128xf32>
    %c1_103 = arith.constant 1 : index
    %c0_104 = arith.constant 0 : index
    %91 = vector.load %arg13[%c1_103, %c0_104] : memref<18x128xf32, #tpu.memory_space<vmem>>, vector<16x128xf32>
    tpu.vector_store %arg13[%c1_103, %c0_104], %90 {strides = array<i32>} : memref<18x128xf32, #tpu.memory_space<vmem>>, vector<16x128xf32>,
    %c1_105 = arith.constant 1 : index
    %c1_106 = arith.constant 1 : index
    %c0_107 = arith.constant 0 : index
    %c0_108 = arith.constant 0 : index
    %92 = vector.load %arg8[%c1_105, %c1_106, %c0_107, %c0_108] : memref<3x2x384x128xbf16, #tpu.memory_space<vmem>>, vector<1x1x384x128xbf16>
    %93 = vector.shape_cast %92 : vector<1x1x384x128xbf16> to vector<384x128xbf16>
    %c1_109 = arith.constant 1 : index
    %c1_110 = arith.constant 1 : index
    %c0_111 = arith.constant 0 : index
    %c0_112 = arith.constant 0 : index
    %94 = vector.load %arg9[%c1_109, %c1_110, %c0_111, %c0_112] : memref<3x2x1x128xf32, #tpu.memory_space<vmem>>, vector<1x1x1x128xf32>
    %95 = vector.shape_cast %94 : vector<1x1x1x128xf32> to vector<1x128xf32>
    %c0_113 = arith.constant 0 : index
    %c0_114 = arith.constant 0 : index
    %96 = vector.load %arg13[%c0_113, %c0_114] : memref<18x128xf32, #tpu.memory_space<vmem>>, vector<16x128xf32>
    %c1_115 = arith.constant 1 : index
    %c0_116 = arith.constant 0 : index
    %97 = vector.load %arg13[%c1_115, %c0_116] : memref<18x128xf32, #tpu.memory_space<vmem>>, vector<16x128xf32>
    %c2_117 = arith.constant 2 : index
    %c0_118 = arith.constant 0 : index
    %98 = vector.load %arg13[%c2_117, %c0_118] : memref<18x128xf32, #tpu.memory_space<vmem>>, vector<16x128xf32>
    %99 = tpu.concatenate %96, %97, %98 in 1 : vector<16x128xf32>, vector<16x128xf32>, vector<16x128xf32> -> vector<16x384xf32>
    %100 = arith.truncf %99 : vector<16x384xf32> to vector<16x384xbf16>
    %cst_119 = arith.constant dense<0.000000e+00> : vector<16x128xf32>
    %101 = tpu.matmul %100, %93, %cst_119 {dimension_numbers = #tpu.dot_dimension_numbers<[1], [0], [0], [1], [0, 0, 1, 1], [], []>} : vector<16x384xbf16>, vector<384x128xbf16>, vector<16x128xf32> -> vector<16x128xf32>
    %102 = vector.broadcast %95 : vector<1x128xf32> to vector<16x128xf32>
    %103 = arith.addf %101, %102 : vector<16x128xf32>
    %c1_120 = arith.constant 1 : index
    %c0_121 = arith.constant 0 : index
    %104 = vector.load %arg12[%c1_120, %c0_121] : memref<18x128xf32, #tpu.memory_space<vmem>>, vector<16x128xf32>
    %105 = arith.addf %103, %104 : vector<16x128xf32>
    %cst_122 = arith.constant 0.000000e+00 : f32
    %106 = vector.broadcast %cst_122 : f32 to vector<16x128xf32>
    %107 = arith.maximumf %105, %106 : vector<16x128xf32>
    %c1_123 = arith.constant 1 : index
    %c0_124 = arith.constant 0 : index
    %108 = vector.load %arg12[%c1_123, %c0_124] : memref<18x128xf32, #tpu.memory_space<vmem>>, vector<16x128xf32>
    tpu.vector_store %arg12[%c1_123, %c0_124], %107 {strides = array<i32>} : memref<18x128xf32, #tpu.memory_space<vmem>>, vector<16x128xf32>,
    %c2_125 = arith.constant 2 : index
    %c0_126 = arith.constant 0 : index
    %c0_127 = arith.constant 0 : index
    %c0_128 = arith.constant 0 : index
    %109 = vector.load %arg8[%c2_125, %c0_126, %c0_127, %c0_128] : memref<3x2x384x128xbf16, #tpu.memory_space<vmem>>, vector<1x1x384x128xbf16>
    %110 = vector.shape_cast %109 : vector<1x1x384x128xbf16> to vector<384x128xbf16>
    %c2_129 = arith.constant 2 : index
    %c0_130 = arith.constant 0 : index
    %c0_131 = arith.constant 0 : index
    %c0_132 = arith.constant 0 : index
    %111 = vector.load %arg9[%c2_129, %c0_130, %c0_131, %c0_132] : memref<3x2x1x128xf32, #tpu.memory_space<vmem>>, vector<1x1x1x128xf32>
    %112 = vector.shape_cast %111 : vector<1x1x1x128xf32> to vector<1x128xf32>
    %c0_133 = arith.constant 0 : index
    %c0_134 = arith.constant 0 : index
    %113 = vector.load %arg12[%c0_133, %c0_134] : memref<18x128xf32, #tpu.memory_space<vmem>>, vector<16x128xf32>
    %c1_135 = arith.constant 1 : index
    %c0_136 = arith.constant 0 : index
    %114 = vector.load %arg12[%c1_135, %c0_136] : memref<18x128xf32, #tpu.memory_space<vmem>>, vector<16x128xf32>
    %c2_137 = arith.constant 2 : index
    %c0_138 = arith.constant 0 : index
    %115 = vector.load %arg12[%c2_137, %c0_138] : memref<18x128xf32, #tpu.memory_space<vmem>>, vector<16x128xf32>
    %116 = tpu.concatenate %113, %114, %115 in 1 : vector<16x128xf32>, vector<16x128xf32>, vector<16x128xf32> -> vector<16x384xf32>
    %117 = arith.truncf %116 : vector<16x384xf32> to vector<16x384xbf16>
    %cst_139 = arith.constant dense<0.000000e+00> : vector<16x128xf32>
    %118 = tpu.matmul %117, %110, %cst_139 {dimension_numbers = #tpu.dot_dimension_numbers<[1], [0], [0], [1], [0, 0, 1, 1], [], []>} : vector<16x384xbf16>, vector<384x128xbf16>, vector<16x128xf32> -> vector<16x128xf32>
    %119 = vector.broadcast %112 : vector<1x128xf32> to vector<16x128xf32>
    %120 = arith.addf %118, %119 : vector<16x128xf32>
    %cst_140 = arith.constant 0.000000e+00 : f32
    %121 = vector.broadcast %cst_140 : f32 to vector<16x128xf32>
    %122 = arith.maximumf %120, %121 : vector<16x128xf32>
    %c1_141 = arith.constant 1 : index
    %c0_142 = arith.constant 0 : index
    %123 = vector.load %arg13[%c1_141, %c0_142] : memref<18x128xf32, #tpu.memory_space<vmem>>, vector<16x128xf32>
    tpu.vector_store %arg13[%c1_141, %c0_142], %122 {strides = array<i32>} : memref<18x128xf32, #tpu.memory_space<vmem>>, vector<16x128xf32>,
    %c2_143 = arith.constant 2 : index
    %c1_144 = arith.constant 1 : index
    %c0_145 = arith.constant 0 : index
    %c0_146 = arith.constant 0 : index
    %124 = vector.load %arg8[%c2_143, %c1_144, %c0_145, %c0_146] : memref<3x2x384x128xbf16, #tpu.memory_space<vmem>>, vector<1x1x384x128xbf16>
    %125 = vector.shape_cast %124 : vector<1x1x384x128xbf16> to vector<384x128xbf16>
    %c2_147 = arith.constant 2 : index
    %c1_148 = arith.constant 1 : index
    %c0_149 = arith.constant 0 : index
    %c0_150 = arith.constant 0 : index
    %126 = vector.load %arg9[%c2_147, %c1_148, %c0_149, %c0_150] : memref<3x2x1x128xf32, #tpu.memory_space<vmem>>, vector<1x1x1x128xf32>
    %127 = vector.shape_cast %126 : vector<1x1x1x128xf32> to vector<1x128xf32>
    %c0_151 = arith.constant 0 : index
    %c0_152 = arith.constant 0 : index
    %128 = vector.load %arg13[%c0_151, %c0_152] : memref<18x128xf32, #tpu.memory_space<vmem>>, vector<16x128xf32>
    %c1_153 = arith.constant 1 : index
    %c0_154 = arith.constant 0 : index
    %129 = vector.load %arg13[%c1_153, %c0_154] : memref<18x128xf32, #tpu.memory_space<vmem>>, vector<16x128xf32>
    %c2_155 = arith.constant 2 : index
    %c0_156 = arith.constant 0 : index
    %130 = vector.load %arg13[%c2_155, %c0_156] : memref<18x128xf32, #tpu.memory_space<vmem>>, vector<16x128xf32>
    %131 = tpu.concatenate %128, %129, %130 in 1 : vector<16x128xf32>, vector<16x128xf32>, vector<16x128xf32> -> vector<16x384xf32>
    %132 = arith.truncf %131 : vector<16x384xf32> to vector<16x384xbf16>
    %cst_157 = arith.constant dense<0.000000e+00> : vector<16x128xf32>
    %133 = tpu.matmul %132, %125, %cst_157 {dimension_numbers = #tpu.dot_dimension_numbers<[1], [0], [0], [1], [0, 0, 1, 1], [], []>} : vector<16x384xbf16>, vector<384x128xbf16>, vector<16x128xf32> -> vector<16x128xf32>
    %134 = vector.broadcast %127 : vector<1x128xf32> to vector<16x128xf32>
    %135 = arith.addf %133, %134 : vector<16x128xf32>
    %c1_158 = arith.constant 1 : index
    %c0_159 = arith.constant 0 : index
    %136 = vector.load %arg12[%c1_158, %c0_159] : memref<18x128xf32, #tpu.memory_space<vmem>>, vector<16x128xf32>
    %137 = arith.addf %135, %136 : vector<16x128xf32>
    %cst_160 = arith.constant 0.000000e+00 : f32
    %138 = vector.broadcast %cst_160 : f32 to vector<16x128xf32>
    %139 = arith.maximumf %137, %138 : vector<16x128xf32>
    %c0_161 = arith.constant 0 : index
    %c0_162 = arith.constant 0 : index
    %c0_163 = arith.constant 0 : index
    %140 = vector.load %arg10[%c0_161, %c0_162, %c0_163] : memref<1x16x128xf32, #tpu.memory_space<vmem>>, vector<1x16x128xf32>
    %141 = vector.shape_cast %140 : vector<1x16x128xf32> to vector<16x128xf32>
    %142 = vector.shape_cast %139 : vector<16x128xf32> to vector<1x16x128xf32>
    tpu.vector_store %arg10[%c0_161, %c0_162, %c0_163], %142 {strides = array<i32>} : memref<1x16x128xf32, #tpu.memory_space<vmem>>, vector<1x16x128xf32>,
    return
  }
  func.func @transform_0(%arg0: i32) -> (i32, i32, i32) {
    %c0_i32 = arith.constant 0 : i32
    %c0_i32_0 = arith.constant 0 : i32
    %c0_i32_1 = arith.constant 0 : i32
    return %arg0, %c0_i32, %c0_i32_0 : i32, i32, i32
  }
  func.func @transform_1(%arg0: i32) -> (i32, i32) {
    %c0_i32 = arith.constant 0 : i32
    %c0_i32_0 = arith.constant 0 : i32
    %c0_i32_1 = arith.constant 0 : i32
    return %c0_i32, %c0_i32_0 : i32, i32
  }
  func.func @transform_2(%arg0: i32) -> (i32, i32) {
    %c0_i32 = arith.constant 0 : i32
    %c0_i32_0 = arith.constant 0 : i32
    %c0_i32_1 = arith.constant 0 : i32
    return %c0_i32, %c0_i32_0 : i32, i32
  }
  func.func @transform_3(%arg0: i32) -> (i32, i32) {
    %c0_i32 = arith.constant 0 : i32
    %c0_i32_0 = arith.constant 0 : i32
    %c0_i32_1 = arith.constant 0 : i32
    return %c0_i32, %c0_i32_0 : i32, i32
  }
  func.func @transform_4(%arg0: i32) -> (i32, i32) {
    %c0_i32 = arith.constant 0 : i32
    %c0_i32_0 = arith.constant 0 : i32
    %c0_i32_1 = arith.constant 0 : i32
    return %c0_i32, %c0_i32_0 : i32, i32
  }
  func.func @transform_5(%arg0: i32) -> (i32, i32) {
    %c0_i32 = arith.constant 0 : i32
    %c0_i32_0 = arith.constant 0 : i32
    %c0_i32_1 = arith.constant 0 : i32
    return %c0_i32, %c0_i32_0 : i32, i32
  }
  func.func @transform_6(%arg0: i32) -> (i32, i32) {
    %c0_i32 = arith.constant 0 : i32
    %c0_i32_0 = arith.constant 0 : i32
    %c0_i32_1 = arith.constant 0 : i32
    return %c0_i32, %c0_i32_0 : i32, i32
  }
  func.func @transform_7(%arg0: i32) -> (i32, i32, i32, i32) {
    %c0_i32 = arith.constant 0 : i32
    %c0_i32_0 = arith.constant 0 : i32
    %c0_i32_1 = arith.constant 0 : i32
    %c0_i32_2 = arith.constant 0 : i32
    %c0_i32_3 = arith.constant 0 : i32
    return %c0_i32, %c0_i32_0, %c0_i32_1, %c0_i32_2 : i32, i32, i32, i32
  }
  func.func @transform_8(%arg0: i32) -> (i32, i32, i32, i32) {
    %c0_i32 = arith.constant 0 : i32
    %c0_i32_0 = arith.constant 0 : i32
    %c0_i32_1 = arith.constant 0 : i32
    %c0_i32_2 = arith.constant 0 : i32
    %c0_i32_3 = arith.constant 0 : i32
    return %c0_i32, %c0_i32_0, %c0_i32_1, %c0_i32_2 : i32, i32, i32, i32
  }
  func.func @transform_9(%arg0: i32) -> (i32, i32, i32) {
    %c0_i32 = arith.constant 0 : i32
    %c0_i32_0 = arith.constant 0 : i32
    %c0_i32_1 = arith.constant 0 : i32
    return %arg0, %c0_i32, %c0_i32_0 : i32, i32, i32
  }
}

</mosaic_0001>

<llo_original>
// kernel: resblock4_fwd.1
$region0: #{resblock4_fwd.1}
  #allocation0 [shape = 'u32[]', space=smem, size = 0x4, offset = 0x4, fixed_abs, tag = 'smem constant byte address 0x4 - core index']
  #allocation1 [shape = 'u32[144,128]{1,0:T(1,128)}', space=vmem, size = 0x12000, scoped, tag = 'internal scratch']
  #allocation2 [shape = 'f32[18,128]{1,0:T(8,128)}', space=vmem, size = 0x3000, scoped, tag = 'scratch operand']
  #allocation3 [shape = 'f32[18,128]{1,0:T(8,128)}', space=vmem, size = 0x3000, scoped, tag = 'scratch operand']
  #allocation4 [shape = 'f32[18,128]{1,0:T(8,128)}', space=vmem, size = 0x3000, scoped, tag = 'scratch operand']
  %s0 = inlined_call_operand.vmem [shape: f32[2,16,128], index: 0, kind: input, shape index: {}]
  %s1 = inlined_call_operand.vmem [shape: bf16[384,128], index: 1, kind: input, shape index: {}]
  %s2 = inlined_call_operand.vmem [shape: f32[1,128], index: 2, kind: input, shape index: {}]
  %s3 = inlined_call_operand.vmem [shape: bf16[384,128], index: 3, kind: input, shape index: {}]
  %s4 = inlined_call_operand.vmem [shape: f32[1,128], index: 4, kind: input, shape index: {}]
  %s5 = inlined_call_operand.vmem [shape: bf16[128,128], index: 5, kind: input, shape index: {}]
  %s6 = inlined_call_operand.vmem [shape: f32[1,128], index: 6, kind: input, shape index: {}]
  %s7 = inlined_call_operand.hbm [shape: bf16[3,2,384,128], index: 7, kind: input, shape index: {}]
  %s8 = inlined_call_operand.vmem [shape: f32[3,2,1,128], index: 8, kind: input, shape index: {}]
  %s9 = inlined_call_operand.vmem [shape: f32[2,16,128], index: 9, kind: output, shape index: {}]
  %s10 = sld [smem:[#allocation0]]
  $region73: #{resblock4_fwd.1} parent=0
    _
  %s12 = ssub.s32 1, %s10
  %s13 = scalar_select 0, %s12, %s10
  $region1: #{resblock4_fwd.1} parent=0
    #allocation5 [shape = 'u8[589824]{0}', space=vmem, size = 0x90000, scoped, tag = 'input window, operand 7, single buffered']
    #allocation6 [shape = 's32[2]{0}', space=sflag, size = 0x8, scoped, tag = 'scoped memory for resblock4_fwd.1']
    %14 = vsyncpa [#allocation6], 0
    loop: start=0, step=1, limit=4
    $region2: #{resblock4_fwd.1} parent=1 // loop_pre_header
      _
    $region3: #{resblock4_fwd.1} parent=1 // loop_header
      %s16 = sphi 0, %s20
      %p17 = scmp.ge.s32.totalorder %s16, 4
      %s26 = sphi 0, %s28
      %s29 = sphi 0, %s26
      %s30 = sphi 0, %s29
      %s46 = sphi 0, %s30
      %s50 = sphi 0, %s50
      %s52 = sphi 0, %s50
      %s53 = sphi 0, %s52
      %s67 = sphi 0, %s53
      %s71 = sphi 0, %s71
      %s73 = sphi 0, %s71
      %s74 = sphi 0, %s73
      %s88 = sphi 0, %s74
      %s92 = sphi 0, %s92
      %s94 = sphi 0, %s92
      %s95 = sphi 0, %s94
      %s109 = sphi 0, %s95
      %s113 = sphi 0, %s113
      %s115 = sphi 0, %s113
      %s116 = sphi 0, %s115
      %s130 = sphi 0, %s116
      %s134 = sphi 0, %s134
      %s136 = sphi 0, %s134
      %s137 = sphi 0, %s136
      %s151 = sphi 0, %s137
      %s155 = sphi 0, %s155
      %s157 = sphi 0, %s155
      %s158 = sphi 0, %s157
      %s172 = sphi 0, %s158
      %s176 = sphi 0, %s176
      %s178 = sphi 0, %s176
      %s179 = sphi 0, %s178
      %s193 = sphi 0, %s179
      %s197 = sphi 0, %s197
      %s199 = sphi 0, %s197
      %s200 = sphi 0, %s199
      %s214 = sphi 0, %s200
      %s220 = sphi 0, %s222
      %s223 = sphi 0, %s220
      %s224 = sphi 0, %s223
      %s240 = sphi 0, %s224
    $region4: #{resblock4_fwd.1} parent=1 // loop_header_branch
      %19 = sbr.rel (%p17) target = $region8
    $region5: #{resblock4_fwd.1} parent=1 // loop_body
      %s21 = ssub.s32 %s16, 1
      %s22 = ssub.s32 %s16, 2
      %s23 = sadd.s32 %s16, 1
      %s24 = ssub.s32 %s16, %s23
      %p25 = scmp.eq.s32.totalorder %s24, 0
      %s27 = sadd.s32 %s26, 1
      %s28 = scalar_select %p25, %s26, %s27
      %p31 = pneg %p25
      %p32 = scmp.eq.s32.totalorder %s16, 1
      %p33 = por %p31, %p32
      %p34 = scmp.ne.s32.totalorder %s26, %s29
      %p35 = scmp.eq.s32.totalorder %s16, 0
      %p36 = por %p34, %p35
      %p37 = scmp.ne.s32.totalorder %s26, %s29
      %p38 = scmp.eq.s32.totalorder %s21, 1
      %p39 = por %p37, %p38
      %p40 = scmp.ne.s32.totalorder %s29, %s30
      %p41 = scmp.eq.s32.totalorder %s21, 0
      %p42 = por %p40, %p41
      %p43 = scmp.ne.s32.totalorder %s29, %s30
      %p44 = scmp.eq.s32.totalorder %s22, 1
      %p45 = por %p43, %p44
      %p47 = scmp.ne.s32.totalorder %s30, %s46
      %p48 = scmp.eq.s32.totalorder %s22, 0
      %p49 = por %p47, %p48
      %s51 = sadd.s32 %s50, 1
      %p54 = scmp.eq.s32.totalorder %s16, 1
      %p55 = scmp.ne.s32.totalorder %s50, %s52
      %p56 = scmp.eq.s32.totalorder %s16, 0
      %p57 = por %p55, %p56
      %p58 = scmp.ne.s32.totalorder %s50, %s52
      %p59 = scmp.eq.s32.totalorder %s21, 1
      %p60 = por %p58, %p59
      %p61 = scmp.ne.s32.totalorder %s52, %s53
      %p62 = scmp.eq.s32.totalorder %s21, 0
      %p63 = por %p61, %p62
      %p64 = scmp.ne.s32.totalorder %s52, %s53
      %p65 = scmp.eq.s32.totalorder %s22, 1
      %p66 = por %p64, %p65
      %p68 = scmp.ne.s32.totalorder %s53, %s67
      %p69 = scmp.eq.s32.totalorder %s22, 0
      %p70 = por %p68, %p69
      %s72 = sadd.s32 %s71, 1
      %p75 = scmp.eq.s32.totalorder %s16, 1
      %p76 = scmp.ne.s32.totalorder %s71, %s73
      %p77 = scmp.eq.s32.totalorder %s16, 0
      %p78 = por %p76, %p77
      %p79 = scmp.ne.s32.totalorder %s71, %s73
      %p80 = scmp.eq.s32.totalorder %s21, 1
      %p81 = por %p79, %p80
      %p82 = scmp.ne.s32.totalorder %s73, %s74
      %p83 = scmp.eq.s32.totalorder %s21, 0
      %p84 = por %p82, %p83
      %p85 = scmp.ne.s32.totalorder %s73, %s74
      %p86 = scmp.eq.s32.totalorder %s22, 1
      %p87 = por %p85, %p86
      %p89 = scmp.ne.s32.totalorder %s74, %s88
      %p90 = scmp.eq.s32.totalorder %s22, 0
      %p91 = por %p89, %p90
      %s93 = sadd.s32 %s92, 1
      %p96 = scmp.eq.s32.totalorder %s16, 1
      %p97 = scmp.ne.s32.totalorder %s92, %s94
      %p98 = scmp.eq.s32.totalorder %s16, 0
      %p99 = por %p97, %p98
      %p100 = scmp.ne.s32.totalorder %s92, %s94
      %p101 = scmp.eq.s32.totalorder %s21, 1
      %p102 = por %p100, %p101
      %p103 = scmp.ne.s32.totalorder %s94, %s95
      %p104 = scmp.eq.s32.totalorder %s21, 0
      %p105 = por %p103, %p104
      %p106 = scmp.ne.s32.totalorder %s94, %s95
      %p107 = scmp.eq.s32.totalorder %s22, 1
      %p108 = por %p106, %p107
      %p110 = scmp.ne.s32.totalorder %s95, %s109
      %p111 = scmp.eq.s32.totalorder %s22, 0
      %p112 = por %p110, %p111
      %s114 = sadd.s32 %s113, 1
      %p117 = scmp.eq.s32.totalorder %s16, 1
      %p118 = scmp.ne.s32.totalorder %s113, %s115
      %p119 = scmp.eq.s32.totalorder %s16, 0
      %p120 = por %p118, %p119
      %p121 = scmp.ne.s32.totalorder %s113, %s115
      %p122 = scmp.eq.s32.totalorder %s21, 1
      %p123 = por %p121, %p122
      %p124 = scmp.ne.s32.totalorder %s115, %s116
      %p125 = scmp.eq.s32.totalorder %s21, 0
      %p126 = por %p124, %p125
      %p127 = scmp.ne.s32.totalorder %s115, %s116
      %p128 = scmp.eq.s32.totalorder %s22, 1
      %p129 = por %p127, %p128
      %p131 = scmp.ne.s32.totalorder %s116, %s130
      %p132 = scmp.eq.s32.totalorder %s22, 0
      %p133 = por %p131, %p132
      %s135 = sadd.s32 %s134, 1
      %p138 = scmp.eq.s32.totalorder %s16, 1
      %p139 = scmp.ne.s32.totalorder %s134, %s136
      %p140 = scmp.eq.s32.totalorder %s16, 0
      %p141 = por %p139, %p140
      %p142 = scmp.ne.s32.totalorder %s134, %s136
      %p143 = scmp.eq.s32.totalorder %s21, 1
      %p144 = por %p142, %p143
      %p145 = scmp.ne.s32.totalorder %s136, %s137
      %p146 = scmp.eq.s32.totalorder %s21, 0
      %p147 = por %p145, %p146
      %p148 = scmp.ne.s32.totalorder %s136, %s137
      %p149 = scmp.eq.s32.totalorder %s22, 1
      %p150 = por %p148, %p149
      %p152 = scmp.ne.s32.totalorder %s137, %s151
      %p153 = scmp.eq.s32.totalorder %s22, 0
      %p154 = por %p152, %p153
      %s156 = sadd.s32 %s155, 1
      %p159 = scmp.eq.s32.totalorder %s16, 1
      %p160 = scmp.ne.s32.totalorder %s155, %s157
      %p161 = scmp.eq.s32.totalorder %s16, 0
      %p162 = por %p160, %p161
      %p163 = scmp.ne.s32.totalorder %s155, %s157
      %p164 = scmp.eq.s32.totalorder %s21, 1
      %p165 = por %p163, %p164
      %p166 = scmp.ne.s32.totalorder %s157, %s158
      %p167 = scmp.eq.s32.totalorder %s21, 0
      %p168 = por %p166, %p167
      %p169 = scmp.ne.s32.totalorder %s157, %s158
      %p170 = scmp.eq.s32.totalorder %s22, 1
      %p171 = por %p169, %p170
      %p173 = scmp.ne.s32.totalorder %s158, %s172
      %p174 = scmp.eq.s32.totalorder %s22, 0
      %p175 = por %p173, %p174
      %s177 = sadd.s32 %s176, 1
      %p180 = scmp.eq.s32.totalorder %s16, 1
      %p181 = scmp.ne.s32.totalorder %s176, %s178
      %p182 = scmp.eq.s32.totalorder %s16, 0
      %p183 = por %p181, %p182
      %p184 = scmp.ne.s32.totalorder %s176, %s178
      %p185 = scmp.eq.s32.totalorder %s21, 1
      %p186 = por %p184, %p185
      %p187 = scmp.ne.s32.totalorder %s178, %s179
      %p188 = scmp.eq.s32.totalorder %s21, 0
      %p189 = por %p187, %p188
      %p190 = scmp.ne.s32.totalorder %s178, %s179
      %p191 = scmp.eq.s32.totalorder %s22, 1
      %p192 = por %p190, %p191
      %p194 = scmp.ne.s32.totalorder %s179, %s193
      %p195 = scmp.eq.s32.totalorder %s22, 0
      %p196 = por %p194, %p195
      %s198 = sadd.s32 %s197, 1
      %p201 = scmp.eq.s32.totalorder %s16, 1
      %p202 = scmp.ne.s32.totalorder %s197, %s199
      %p203 = scmp.eq.s32.totalorder %s16, 0
      %p204 = por %p202, %p203
      %p205 = scmp.ne.s32.totalorder %s197, %s199
      %p206 = scmp.eq.s32.totalorder %s21, 1
      %p207 = por %p205, %p206
      %p208 = scmp.ne.s32.totalorder %s199, %s200
      %p209 = scmp.eq.s32.totalorder %s21, 0
      %p210 = por %p208, %p209
      %p211 = scmp.ne.s32.totalorder %s199, %s200
      %p212 = scmp.eq.s32.totalorder %s22, 1
      %p213 = por %p211, %p212
      %p215 = scmp.ne.s32.totalorder %s200, %s214
      %p216 = scmp.eq.s32.totalorder %s22, 0
      %p217 = por %p215, %p216
      %s218 = ssub.s32 %s16, %s23
      %p219 = scmp.eq.s32.totalorder %s218, 0
      %s221 = sadd.s32 %s220, 1
      %s222 = scalar_select %p219, %s220, %s221
      %p225 = pneg %p219
      %p226 = scmp.eq.s32.totalorder %s16, 1
      %p227 = por %p225, %p226
      %p228 = scmp.ne.s32.totalorder %s220, %s223
      %p229 = scmp.eq.s32.totalorder %s16, 0
      %p230 = por %p228, %p229
      %p231 = scmp.ne.s32.totalorder %s220, %s223
      %p232 = scmp.eq.s32.totalorder %s21, 1
      %p233 = por %p231, %p232
      %p234 = scmp.ne.s32.totalorder %s223, %s224
      %p235 = scmp.eq.s32.totalorder %s21, 0
      %p236 = por %p234, %p235
      %p237 = scmp.ne.s32.totalorder %s223, %s224
      %p238 = scmp.eq.s32.totalorder %s22, 1
      %p239 = por %p237, %p238
      %p241 = scmp.ne.s32.totalorder %s224, %s240
      %p242 = scmp.eq.s32.totalorder %s22, 0
      %p243 = por %p241, %p242
      %p244 = scmp.le.s32.totalorder 1, %s16
      %p245 = scmp.lt.s32.totalorder %s16, 3
      %p246 = pnand %p244, %p245
      %p247 = pneg %p246
      // Predicated region
      $region9: #{resblock4_fwd.1} parent=5 // pred_check
        _
      $region10: #{resblock4_fwd.1} parent=5 // pred_check_branch
        %249 = sbr.rel (%p246) target = $region12
      $region11: #{resblock4_fwd.1} parent=5 // pred_region
        %s250 = ssub.s32 %s16, 1
        // Predicated region
        $region13: #{resblock4_fwd.1} parent=11 // pred_check
          %p251 = pneg %p63
        $region14: #{resblock4_fwd.1} parent=11 // pred_check_branch
          %253 = sbr.rel (%p251) target = $region16
        $region15: #{resblock4_fwd.1} parent=11 // pred_region
          _
        $region16: #{resblock4_fwd.1} parent=11 // pred_fallthru
          _
        // Predicated region
        $region17: #{resblock4_fwd.1} parent=11 // pred_check
          %p254 = pneg %p84
        $region18: #{resblock4_fwd.1} parent=11 // pred_check_branch
          %256 = sbr.rel (%p254) target = $region20
        $region19: #{resblock4_fwd.1} parent=11 // pred_region
          _
        $region20: #{resblock4_fwd.1} parent=11 // pred_fallthru
          _
        // Predicated region
        $region21: #{resblock4_fwd.1} parent=11 // pred_check
          %p257 = pneg %p105
        $region22: #{resblock4_fwd.1} parent=11 // pred_check_branch
          %259 = sbr.rel (%p257) target = $region24
        $region23: #{resblock4_fwd.1} parent=11 // pred_region
          _
        $region24: #{resblock4_fwd.1} parent=11 // pred_fallthru
          _
        // Predicated region
        $region25: #{resblock4_fwd.1} parent=11 // pred_check
          %p260 = pneg %p126
        $region26: #{resblock4_fwd.1} parent=11 // pred_check_branch
          %262 = sbr.rel (%p260) target = $region28
        $region27: #{resblock4_fwd.1} parent=11 // pred_region
          _
        $region28: #{resblock4_fwd.1} parent=11 // pred_fallthru
          _
        // Predicated region
        $region29: #{resblock4_fwd.1} parent=11 // pred_check
          %p263 = pneg %p147
        $region30: #{resblock4_fwd.1} parent=11 // pred_check_branch
          %265 = sbr.rel (%p263) target = $region32
        $region31: #{resblock4_fwd.1} parent=11 // pred_region
          _
        $region32: #{resblock4_fwd.1} parent=11 // pred_fallthru
          _
        // Predicated region
        $region33: #{resblock4_fwd.1} parent=11 // pred_check
          %p266 = pneg %p168
        $region34: #{resblock4_fwd.1} parent=11 // pred_check_branch
          %268 = sbr.rel (%p266) target = $region36
        $region35: #{resblock4_fwd.1} parent=11 // pred_region
          _
        $region36: #{resblock4_fwd.1} parent=11 // pred_fallthru
          _
        // Predicated region
        $region37: #{resblock4_fwd.1} parent=11 // pred_check
          %p269 = pneg %p189
        $region38: #{resblock4_fwd.1} parent=11 // pred_check_branch
          %271 = sbr.rel (%p269) target = $region40
        $region39: #{resblock4_fwd.1} parent=11 // pred_region
          %s273 = ssub.s32 18432, 18432
          %274 = vsyncadd [#allocation6], %s273
          %s275 = sshll.u32 [#allocation5], 4
          %s276 = int_to_ptr.vmem [resolvable:$true] %s275
          %281 = dma.hbm_to_vmem [thread:$0]  %s7, 18432, %s276, [#allocation6], 64, 64, 4
        $region40: #{resblock4_fwd.1} parent=11 // pred_fallthru
          _
        // Predicated region
        $region41: #{resblock4_fwd.1} parent=11 // pred_check
          %p282 = pneg %p210
        $region42: #{resblock4_fwd.1} parent=11 // pred_check_branch
          %284 = sbr.rel (%p282) target = $region44
        $region43: #{resblock4_fwd.1} parent=11 // pred_region
          _
        $region44: #{resblock4_fwd.1} parent=11 // pred_fallthru
          _
      $region12: #{resblock4_fwd.1} parent=5 // pred_fallthru
        _
      %p285 = scmp.lt.s32.totalorder %s16, 2
      // Predicated region
      $region45: #{resblock4_fwd.1} parent=5 // pred_check
        %p286 = pneg %p285
      $region46: #{resblock4_fwd.1} parent=5 // pred_check_branch
        %288 = sbr.rel (%p286) target = $region48
      $region47: #{resblock4_fwd.1} parent=5 // pred_region
        // Predicated region
        $region49: #{resblock4_fwd.1} parent=47 // pred_check
          %p289 = pneg %p36
        $region50: #{resblock4_fwd.1} parent=47 // pred_check_branch
          %291 = sbr.rel (%p289) target = $region52
        $region51: #{resblock4_fwd.1} parent=47 // pred_region
          %p292 = scmp.lt.s32.totalorder %s16, 1
          %s293 = scalar_select %p292, %s16, 1
          %s294 = smul.addr %s293, 2
          %s295 = smul.addr %s294, 8
          %s296 = scalar_lea.vmem %s0, %s295
        $region52: #{resblock4_fwd.1} parent=47 // pred_fallthru
          _
      $region48: #{resblock4_fwd.1} parent=5 // pred_fallthru
        _
      %p297 = scmp.le.s32.totalorder 1, %s16
      %p298 = scmp.lt.s32.totalorder %s16, 3
      %p299 = pnand %p297, %p298
      %p300 = pneg %p299
      // Predicated region
      $region53: #{resblock4_fwd.1} parent=5 // pred_check
        _
      $region54: #{resblock4_fwd.1} parent=5 // pred_check_branch
        %302 = sbr.rel (%p299) target = $region56
      $region55: #{resblock4_fwd.1} parent=5 // pred_region
        %s303 = ssub.s32 %s16, 1
        // Predicated region
        $region57: #{resblock4_fwd.1} parent=55 // pred_check
          %p304 = pneg %p189
        $region58: #{resblock4_fwd.1} parent=55 // pred_check_branch
          %306 = sbr.rel (%p304) target = $region60
        $region59: #{resblock4_fwd.1} parent=55 // pred_region
          %307 = dma.done [#allocation6], 18432
        $region60: #{resblock4_fwd.1} parent=55 // pred_fallthru
          _
        %p308 = scmp.lt.s32.totalorder %s21, 1
        %s309 = scalar_select %p308, %s21, 1
        %s310 = smul.addr %s309, 2
        %s311 = smul.addr %s310, 8
        %s312 = scalar_lea.vmem %s0, %s311
        %p313 = pneg %p42
        %p314 = pneg %p39
        %p315 = pneg %p63
        %p316 = pneg %p60
        %p317 = pneg %p84
        %p318 = pneg %p81
        %p319 = pneg %p105
        %p320 = pneg %p102
        %p321 = pneg %p126
        %p322 = pneg %p123
        %p323 = pneg %p147
        %p324 = pneg %p144
        %p325 = pneg %p168
        %p326 = pneg %p165
        %p327 = pneg %p189
        %p328 = pneg %p186
        %p329 = pneg %p210
        %p330 = pneg %p207
        %p331 = pneg %p236
        %p332 = pneg %p233
        %p333 = scmp.lt.s32.totalorder %s21, 1
        %s334 = scalar_select %p333, %s21, 1
        %s335 = smul.addr %s334, 2
        %s336 = smul.addr %s335, 8
        %s337 = scalar_lea.vmem %s9, %s336
        %p338 = scmp.lt.s32.totalorder %s21, 1
        %s339 = scalar_select %p338, %s21, 1
        %s340 = smul.addr %s339, 2
        %s341 = smul.addr %s340, 8
        %s342 = scalar_lea.vmem %s0, %s341
        %p343 = scmp.lt.s32.totalorder %s21, 1
        %s344 = scalar_select %p343, %s21, 1
        %s345 = smul.addr %s344, 2
        %s346 = smul.addr %s345, 8
        %s347 = scalar_lea.vmem %s9, %s346
        %349 = vst [vmem:[#allocation2] sm:$0x1] 0.0
        %350 = vst [vmem:[#allocation2 + $0x11] sm:$0x1] 0.0
        %351 = vst [vmem:[#allocation3] sm:$0x1] 0.0
        %352 = vst [vmem:[#allocation3 + $0x11] sm:$0x1] 0.0
        %353 = vst [vmem:[#allocation4] sm:$0x1] 0.0
        %354 = vst [vmem:[#allocation4 + $0x11] sm:$0x1] 0.0
        %v355 = vld [vmem:[%s342] sm:$0xff]
        %v356 = vld [vmem:[%s342 + $0x8] sm:$0xff]
        %357 = vst [vmem:[#allocation2 + $0x1] sm:$0xff] %v355
        %358 = vst [vmem:[#allocation2 + $0x9] sm:$0xff] %v356
        %v359 = vld [vmem:[%s1] sm:$0xf]
        %v360 = vld [vmem:[%s1 + $0x4] sm:$0xf]
        %v361 = vld [vmem:[%s1 + $0x8] sm:$0xf]
        %v362 = vld [vmem:[%s1 + $0xc] sm:$0xf]
        %v363 = vld [vmem:[%s1 + $0x10] sm:$0xf]
        %v364 = vld [vmem:[%s1 + $0x14] sm:$0xf]
        %v365 = vld [vmem:[%s1 + $0x18] sm:$0xf]
        %v366 = vld [vmem:[%s1 + $0x1c] sm:$0xf]
        %v367 = vld [vmem:[%s1 + $0x20] sm:$0xf]
        %v368 = vld [vmem:[%s1 + $0x24] sm:$0xf]
        %v369 = vld [vmem:[%s1 + $0x28] sm:$0xf]
        %v370 = vld [vmem:[%s1 + $0x2c] sm:$0xf]
        %v371 = vld [vmem:[%s1 + $0x30] sm:$0xf]
        %v372 = vld [vmem:[%s1 + $0x34] sm:$0xf]
        %v373 = vld [vmem:[%s1 + $0x38] sm:$0xf]
        %v374 = vld [vmem:[%s1 + $0x3c] sm:$0xf]
        %v375 = vld [vmem:[%s1 + $0x40] sm:$0xf]
        %v376 = vld [vmem:[%s1 + $0x44] sm:$0xf]
        %v377 = vld [vmem:[%s1 + $0x48] sm:$0xf]
        %v378 = vld [vmem:[%s1 + $0x4c] sm:$0xf]
        %v379 = vld [vmem:[%s1 + $0x50] sm:$0xf]
        %v380 = vld [vmem:[%s1 + $0x54] sm:$0xf]
        %v381 = vld [vmem:[%s1 + $0x58] sm:$0xf]
        %v382 = vld [vmem:[%s1 + $0x5c] sm:$0xf]
        %v383 = vld [vmem:[%s1 + $0x60] sm:$0xf]
        %v384 = vld [vmem:[%s1 + $0x64] sm:$0xf]
        %v385 = vld [vmem:[%s1 + $0x68] sm:$0xf]
        %v386 = vld [vmem:[%s1 + $0x6c] sm:$0xf]
        %v387 = vld [vmem:[%s1 + $0x70] sm:$0xf]
        %v388 = vld [vmem:[%s1 + $0x74] sm:$0xf]
        %v389 = vld [vmem:[%s1 + $0x78] sm:$0xf]
        %v390 = vld [vmem:[%s1 + $0x7c] sm:$0xf]
        %v391 = vld [vmem:[%s1 + $0x80] sm:$0xf]
        %v392 = vld [vmem:[%s1 + $0x84] sm:$0xf]
        %v393 = vld [vmem:[%s1 + $0x88] sm:$0xf]
        %v394 = vld [vmem:[%s1 + $0x8c] sm:$0xf]
        %v395 = vld [vmem:[%s1 + $0x90] sm:$0xf]
        %v396 = vld [vmem:[%s1 + $0x94] sm:$0xf]
        %v397 = vld [vmem:[%s1 + $0x98] sm:$0xf]
        %v398 = vld [vmem:[%s1 + $0x9c] sm:$0xf]
        %v399 = vld [vmem:[%s1 + $0xa0] sm:$0xf]
        %v400 = vld [vmem:[%s1 + $0xa4] sm:$0xf]
        %v401 = vld [vmem:[%s1 + $0xa8] sm:$0xf]
        %v402 = vld [vmem:[%s1 + $0xac] sm:$0xf]
        %v403 = vld [vmem:[%s1 + $0xb0] sm:$0xf]
        %v404 = vld [vmem:[%s1 + $0xb4] sm:$0xf]
        %v405 = vld [vmem:[%s1 + $0xb8] sm:$0xf]
        %v406 = vld [vmem:[%s1 + $0xbc] sm:$0xf]
        %v407 = vld [vmem:[%s2] sm:$0x1]
        %v408 = vld [vmem:[#allocation2] sm:$0xff]
        %v409 = vld [vmem:[#allocation2 + $0x8] sm:$0xff]
        %v410 = vld [vmem:[#allocation2 + $0x1] sm:$0xff]
        %v411 = vld [vmem:[#allocation2 + $0x9] sm:$0xff]
        %v412 = vld [vmem:[#allocation2 + $0x2] sm:$0xff]
        %v413 = vld [vmem:[#allocation2 + $0xa] sm:$0xff]
        %v414 = vpack.c.bf16 %v409, %v408
        %v415 = vpack.c.bf16 %v411, %v410
        %v416 = vpack.c.bf16 %v413, %v412
        %v418 = vlaneseq
        %v419 = vshrl.u32 %v418, 7
        %v420 = vsub.s32 0, %v419
        %v421 = vrot.slane %v407, %v420
        %v471 = vunpack.c.l.b16 %v359
        %v472 = vunpack.c.l.b16 %v360
        %v473 = vunpack.c.l.b16 %v361
        %v474 = vunpack.c.l.b16 %v362
        %v475 = vunpack.c.l.b16 %v363
        %v476 = vunpack.c.l.b16 %v364
        %v477 = vunpack.c.l.b16 %v365
        %v478 = vunpack.c.l.b16 %v366
        %v479 = vunpack.c.l.b16 %v367
        %v480 = vunpack.c.l.b16 %v368
        %v481 = vunpack.c.l.b16 %v369
        %v482 = vunpack.c.l.b16 %v370
        %v483 = vunpack.c.l.b16 %v371
        %v484 = vunpack.c.l.b16 %v372
        %v485 = vunpack.c.l.b16 %v373
        %v486 = vunpack.c.l.b16 %v374
        %v487 = vunpack.c.l.b16 %v375
        %v488 = vunpack.c.l.b16 %v376
        %v489 = vunpack.c.l.b16 %v377
        %v490 = vunpack.c.l.b16 %v378
        %v491 = vunpack.c.l.b16 %v379
        %v492 = vunpack.c.l.b16 %v380
        %v493 = vunpack.c.l.b16 %v381
        %v494 = vunpack.c.l.b16 %v382
        %v495 = vunpack.c.l.b16 %v383
        %v496 = vunpack.c.l.b16 %v384
        %v497 = vunpack.c.l.b16 %v385
        %v498 = vunpack.c.l.b16 %v386
        %v499 = vunpack.c.l.b16 %v387
        %v500 = vunpack.c.l.b16 %v388
        %v501 = vunpack.c.l.b16 %v389
        %v502 = vunpack.c.l.b16 %v390
        %v503 = vunpack.c.l.b16 %v391
        %v504 = vunpack.c.l.b16 %v392
        %v505 = vunpack.c.l.b16 %v393
        %v506 = vunpack.c.l.b16 %v394
        %v507 = vunpack.c.l.b16 %v395
        %v508 = vunpack.c.l.b16 %v396
        %v509 = vunpack.c.l.b16 %v397
        %v510 = vunpack.c.l.b16 %v398
        %v511 = vunpack.c.l.b16 %v399
        %v512 = vunpack.c.l.b16 %v400
        %v513 = vunpack.c.l.b16 %v401
        %v514 = vunpack.c.l.b16 %v402
        %v515 = vunpack.c.l.b16 %v403
        %v516 = vunpack.c.l.b16 %v404
        %v517 = vunpack.c.l.b16 %v405
        %v518 = vunpack.c.l.b16 %v406
        %v519 = vpack.c.b16 %v472, %v471
        %v520 = vpack.c.b16 %v474, %v473
        %v521 = vpack.c.b16 %v476, %v475
        %v522 = vpack.c.b16 %v478, %v477
        %v523 = vpack.c.b16 %v480, %v479
        %v524 = vpack.c.b16 %v482, %v481
        %v525 = vpack.c.b16 %v484, %v483
        %v526 = vpack.c.b16 %v486, %v485
        %v527 = vpack.c.b16 %v488, %v487
        %v528 = vpack.c.b16 %v490, %v489
        %v529 = vpack.c.b16 %v492, %v491
        %v530 = vpack.c.b16 %v494, %v493
        %v531 = vpack.c.b16 %v496, %v495
        %v532 = vpack.c.b16 %v498, %v497
        %v533 = vpack.c.b16 %v500, %v499
        %v534 = vpack.c.b16 %v502, %v501
        %v535 = vpack.c.b16 %v504, %v503
        %v536 = vpack.c.b16 %v506, %v505
        %v537 = vpack.c.b16 %v508, %v507
        %v538 = vpack.c.b16 %v510, %v509
        %v539 = vpack.c.b16 %v512, %v511
        %v540 = vpack.c.b16 %v514, %v513
        %v541 = vpack.c.b16 %v516, %v515
        %v542 = vpack.c.b16 %v518, %v517
        %567 = vmatprep.subr.bf16.mxu0 0
        %568 = vmatpush1.bf16.msra.mxu0 %v526
        %569 = vmatprep.subr.bf16.mxu0 0
        %570 = vmatpush1.bf16.msra.mxu0 %v525
        %571 = vmatprep.subr.bf16.mxu0 0
        %572 = vmatpush1.bf16.msra.mxu0 %v524
        %573 = vmatprep.subr.bf16.mxu0 0
        %574 = vmatpush1.bf16.msra.mxu0 %v523
        %575 = vmatprep.subr.bf16.mxu0 0
        %576 = vmatpush1.bf16.msra.mxu0 %v522
        %577 = vmatprep.subr.bf16.mxu0 0
        %578 = vmatpush1.bf16.msra.mxu0 %v521
        %579 = vmatprep.subr.bf16.mxu0 0
        %580 = vmatpush1.bf16.msra.mxu0 %v520
        %581 = vmatprep.subr.bf16.mxu0 0
        %582 = vmatpush1.bf16.msra.mxu0 %v519
        %583 = vmatprep.subr.bf16.mxu0 0
        %584 = vmatpush2.bf16.msra.mxu0 %v534
        %585 = vmatprep.subr.bf16.mxu0 0
        %586 = vmatpush2.bf16.msra.mxu0 %v533
        %587 = vmatprep.subr.bf16.mxu0 0
        %588 = vmatpush2.bf16.msra.mxu0 %v532
        %589 = vmatprep.subr.bf16.mxu0 0
        %590 = vmatpush2.bf16.msra.mxu0 %v531
        %591 = vmatprep.subr.bf16.mxu0 0
        %592 = vmatpush2.bf16.msra.mxu0 %v530
        %593 = vmatprep.subr.bf16.mxu0 0
        %594 = vmatpush2.bf16.msra.mxu0 %v529
        %595 = vmatprep.subr.bf16.mxu0 0
        %596 = vmatpush2.bf16.msra.mxu0 %v528
        %597 = vmatprep.subr.bf16.mxu0 0
        %598 = vmatpush2.bf16.msra.mxu0 %v527
        %599 = vmatprep.mubr.bf16.mxu0 %v415
        %600 = vmatmul.mubr.bf16.gmra.mxu0 %v414
        %v601 = vpop.f32.mrf.mxu0
        %v602 = vadd.f32 %v421, %v601
        %v603 = vpop.f32.mrf.mxu0
        %v604 = vpop.f32.mrf.mxu0
        %v605 = vadd.f32 %v421, %v604
        %v606 = vpop.f32.mrf.mxu0
        %607 = vdwg.mxu0
        %608 = vmatprep.subr.bf16.mxu0 0
        %609 = vmatpush1.bf16.msra.mxu0 %v542
        %610 = vmatprep.subr.bf16.mxu0 0
        %611 = vmatpush1.bf16.msra.mxu0 %v541
        %612 = vmatprep.subr.bf16.mxu0 0
        %613 = vmatpush1.bf16.msra.mxu0 %v540
        %614 = vmatprep.subr.bf16.mxu0 0
        %615 = vmatpush1.bf16.msra.mxu0 %v539
        %616 = vmatprep.subr.bf16.mxu0 0
        %617 = vmatpush1.bf16.msra.mxu0 %v538
        %618 = vmatprep.subr.bf16.mxu0 0
        %619 = vmatpush1.bf16.msra.mxu0 %v537
        %620 = vmatprep.subr.bf16.mxu0 0
        %621 = vmatpush1.bf16.msra.mxu0 %v536
        %622 = vmatprep.subr.bf16.mxu0 0
        %623 = vmatpush1.bf16.msra.mxu0 %v535
        %624 = vmatprep.subr.bf16.mxu0 0
        %625 = vmatpush2.bf16.msra.mxu0 0
        %626 = vmatprep.subr.bf16.mxu0 0
        %627 = vmatpush2.bf16.msra.mxu0 0
        %628 = vmatprep.subr.bf16.mxu0 0
        %629 = vmatpush2.bf16.msra.mxu0 0
        %630 = vmatprep.subr.bf16.mxu0 0
        %631 = vmatpush2.bf16.msra.mxu0 0
        %632 = vmatprep.subr.bf16.mxu0 0
        %633 = vmatpush2.bf16.msra.mxu0 0
        %634 = vmatprep.subr.bf16.mxu0 0
        %635 = vmatpush2.bf16.msra.mxu0 0
        %636 = vmatprep.subr.bf16.mxu0 0
        %637 = vmatpush2.bf16.msra.mxu0 0
        %638 = vmatprep.subr.bf16.mxu0 0
        %639 = vmatpush2.bf16.msra.mxu0 0
        %640 = vmatprep.mubr.bf16.mxu0 0
        %641 = vmatmul.mubr.bf16.gmra.mxu0 %v416
        %v642 = vpop.f32.mrf.mxu0
        %v643 = vadd.f32 %v602, %v642
        %v644 = vpop.f32.mrf.mxu0
        %v645 = vpop.f32.mrf.mxu0
        %v646 = vadd.f32 %v605, %v645
        %v647 = vpop.f32.mrf.mxu0
        %648 = vdwg.mxu0
        %v649 = vmax.f32 %v643, 0.0
        %v650 = vmax.f32 %v646, 0.0
        %651 = vst [vmem:[#allocation4 + $0x1] sm:$0xff] %v649
        %652 = vst [vmem:[#allocation4 + $0x9] sm:$0xff] %v650
        %v653 = vld [vmem:[%s3] sm:$0xf]
        %v654 = vld [vmem:[%s3 + $0x4] sm:$0xf]
        %v655 = vld [vmem:[%s3 + $0x8] sm:$0xf]
        %v656 = vld [vmem:[%s3 + $0xc] sm:$0xf]
        %v657 = vld [vmem:[%s3 + $0x10] sm:$0xf]
        %v658 = vld [vmem:[%s3 + $0x14] sm:$0xf]
        %v659 = vld [vmem:[%s3 + $0x18] sm:$0xf]
        %v660 = vld [vmem:[%s3 + $0x1c] sm:$0xf]
        %v661 = vld [vmem:[%s3 + $0x20] sm:$0xf]
        %v662 = vld [vmem:[%s3 + $0x24] sm:$0xf]
        %v663 = vld [vmem:[%s3 + $0x28] sm:$0xf]
        %v664 = vld [vmem:[%s3 + $0x2c] sm:$0xf]
        %v665 = vld [vmem:[%s3 + $0x30] sm:$0xf]
        %v666 = vld [vmem:[%s3 + $0x34] sm:$0xf]
        %v667 = vld [vmem:[%s3 + $0x38] sm:$0xf]
        %v668 = vld [vmem:[%s3 + $0x3c] sm:$0xf]
        %v669 = vld [vmem:[%s3 + $0x40] sm:$0xf]
        %v670 = vld [vmem:[%s3 + $0x44] sm:$0xf]
        %v671 = vld [vmem:[%s3 + $0x48] sm:$0xf]
        %v672 = vld [vmem:[%s3 + $0x4c] sm:$0xf]
        %v673 = vld [vmem:[%s3 + $0x50] sm:$0xf]
        %v674 = vld [vmem:[%s3 + $0x54] sm:$0xf]
        %v675 = vld [vmem:[%s3 + $0x58] sm:$0xf]
        %v676 = vld [vmem:[%s3 + $0x5c] sm:$0xf]
        %v677 = vld [vmem:[%s3 + $0x60] sm:$0xf]
        %v678 = vld [vmem:[%s3 + $0x64] sm:$0xf]
        %v679 = vld [vmem:[%s3 + $0x68] sm:$0xf]
        %v680 = vld [vmem:[%s3 + $0x6c] sm:$0xf]
        %v681 = vld [vmem:[%s3 + $0x70] sm:$0xf]
        %v682 = vld [vmem:[%s3 + $0x74] sm:$0xf]
        %v683 = vld [vmem:[%s3 + $0x78] sm:$0xf]
        %v684 = vld [vmem:[%s3 + $0x7c] sm:$0xf]
        %v685 = vld [vmem:[%s3 + $0x80] sm:$0xf]
        %v686 = vld [vmem:[%s3 + $0x84] sm:$0xf]
        %v687 = vld [vmem:[%s3 + $0x88] sm:$0xf]
        %v688 = vld [vmem:[%s3 + $0x8c] sm:$0xf]
        %v689 = vld [vmem:[%s3 + $0x90] sm:$0xf]
        %v690 = vld [vmem:[%s3 + $0x94] sm:$0xf]
        %v691 = vld [vmem:[%s3 + $0x98] sm:$0xf]
        %v692 = vld [vmem:[%s3 + $0x9c] sm:$0xf]
        %v693 = vld [vmem:[%s3 + $0xa0] sm:$0xf]
        %v694 = vld [vmem:[%s3 + $0xa4] sm:$0xf]
        %v695 = vld [vmem:[%s3 + $0xa8] sm:$0xf]
        %v696 = vld [vmem:[%s3 + $0xac] sm:$0xf]
        %v697 = vld [vmem:[%s3 + $0xb0] sm:$0xf]
        %v698 = vld [vmem:[%s3 + $0xb4] sm:$0xf]
        %v699 = vld [vmem:[%s3 + $0xb8] sm:$0xf]
        %v700 = vld [vmem:[%s3 + $0xbc] sm:$0xf]
        %v701 = vld [vmem:[%s4] sm:$0x1]
        %v702 = vld [vmem:[#allocation4] sm:$0xff]
        %v703 = vld [vmem:[#allocation4 + $0x8] sm:$0xff]
        %v704 = vld [vmem:[#allocation4 + $0x1] sm:$0xff]
        %v705 = vld [vmem:[#allocation4 + $0x9] sm:$0xff]
        %v706 = vld [vmem:[#allocation4 + $0x2] sm:$0xff]
        %v707 = vld [vmem:[#allocation4 + $0xa] sm:$0xff]
        %v708 = vpack.c.bf16 %v703, %v702
        %v709 = vpack.c.bf16 %v705, %v704
        %v710 = vpack.c.bf16 %v707, %v706
        %v712 = vlaneseq
        %v713 = vshrl.u32 %v712, 7
        %v714 = vsub.s32 0, %v713
        %v715 = vrot.slane %v701, %v714
        %v765 = vunpack.c.l.b16 %v653
        %v766 = vunpack.c.l.b16 %v654
        %v767 = vunpack.c.l.b16 %v655
        %v768 = vunpack.c.l.b16 %v656
        %v769 = vunpack.c.l.b16 %v657
        %v770 = vunpack.c.l.b16 %v658
        %v771 = vunpack.c.l.b16 %v659
        %v772 = vunpack.c.l.b16 %v660
        %v773 = vunpack.c.l.b16 %v661
        %v774 = vunpack.c.l.b16 %v662
        %v775 = vunpack.c.l.b16 %v663
        %v776 = vunpack.c.l.b16 %v664
        %v777 = vunpack.c.l.b16 %v665
        %v778 = vunpack.c.l.b16 %v666
        %v779 = vunpack.c.l.b16 %v667
        %v780 = vunpack.c.l.b16 %v668
        %v781 = vunpack.c.l.b16 %v669
        %v782 = vunpack.c.l.b16 %v670
        %v783 = vunpack.c.l.b16 %v671
        %v784 = vunpack.c.l.b16 %v672
        %v785 = vunpack.c.l.b16 %v673
        %v786 = vunpack.c.l.b16 %v674
        %v787 = vunpack.c.l.b16 %v675
        %v788 = vunpack.c.l.b16 %v676
        %v789 = vunpack.c.l.b16 %v677
        %v790 = vunpack.c.l.b16 %v678
        %v791 = vunpack.c.l.b16 %v679
        %v792 = vunpack.c.l.b16 %v680
        %v793 = vunpack.c.l.b16 %v681
        %v794 = vunpack.c.l.b16 %v682
        %v795 = vunpack.c.l.b16 %v683
        %v796 = vunpack.c.l.b16 %v684
        %v797 = vunpack.c.l.b16 %v685
        %v798 = vunpack.c.l.b16 %v686
        %v799 = vunpack.c.l.b16 %v687
        %v800 = vunpack.c.l.b16 %v688
        %v801 = vunpack.c.l.b16 %v689
        %v802 = vunpack.c.l.b16 %v690
        %v803 = vunpack.c.l.b16 %v691
        %v804 = vunpack.c.l.b16 %v692
        %v805 = vunpack.c.l.b16 %v693
        %v806 = vunpack.c.l.b16 %v694
        %v807 = vunpack.c.l.b16 %v695
        %v808 = vunpack.c.l.b16 %v696
        %v809 = vunpack.c.l.b16 %v697
        %v810 = vunpack.c.l.b16 %v698
        %v811 = vunpack.c.l.b16 %v699
        %v812 = vunpack.c.l.b16 %v700
        %v813 = vpack.c.b16 %v766, %v765
        %v814 = vpack.c.b16 %v768, %v767
        %v815 = vpack.c.b16 %v770, %v769
        %v816 = vpack.c.b16 %v772, %v771
        %v817 = vpack.c.b16 %v774, %v773
        %v818 = vpack.c.b16 %v776, %v775
        %v819 = vpack.c.b16 %v778, %v777
        %v820 = vpack.c.b16 %v780, %v779
        %v821 = vpack.c.b16 %v782, %v781
        %v822 = vpack.c.b16 %v784, %v783
        %v823 = vpack.c.b16 %v786, %v785
        %v824 = vpack.c.b16 %v788, %v787
        %v825 = vpack.c.b16 %v790, %v789
        %v826 = vpack.c.b16 %v792, %v791
        %v827 = vpack.c.b16 %v794, %v793
        %v828 = vpack.c.b16 %v796, %v795
        %v829 = vpack.c.b16 %v798, %v797
        %v830 = vpack.c.b16 %v800, %v799
        %v831 = vpack.c.b16 %v802, %v801
        %v832 = vpack.c.b16 %v804, %v803
        %v833 = vpack.c.b16 %v806, %v805
        %v834 = vpack.c.b16 %v808, %v807
        %v835 = vpack.c.b16 %v810, %v809
        %v836 = vpack.c.b16 %v812, %v811
        %861 = vmatprep.subr.bf16.mxu0 0
        %862 = vmatpush1.bf16.msra.mxu0 %v820
        %863 = vmatprep.subr.bf16.mxu0 0
        %864 = vmatpush1.bf16.msra.mxu0 %v819
        %865 = vmatprep.subr.bf16.mxu0 0
        %866 = vmatpush1.bf16.msra.mxu0 %v818
        %867 = vmatprep.subr.bf16.mxu0 0
        %868 = vmatpush1.bf16.msra.mxu0 %v817
        %869 = vmatprep.subr.bf16.mxu0 0
        %870 = vmatpush1.bf16.msra.mxu0 %v816
        %871 = vmatprep.subr.bf16.mxu0 0
        %872 = vmatpush1.bf16.msra.mxu0 %v815
        %873 = vmatprep.subr.bf16.mxu0 0
        %874 = vmatpush1.bf16.msra.mxu0 %v814
        %875 = vmatprep.subr.bf16.mxu0 0
        %876 = vmatpush1.bf16.msra.mxu0 %v813
        %877 = vmatprep.subr.bf16.mxu0 0
        %878 = vmatpush2.bf16.msra.mxu0 %v828
        %879 = vmatprep.subr.bf16.mxu0 0
        %880 = vmatpush2.bf16.msra.mxu0 %v827
        %881 = vmatprep.subr.bf16.mxu0 0
        %882 = vmatpush2.bf16.msra.mxu0 %v826
        %883 = vmatprep.subr.bf16.mxu0 0
        %884 = vmatpush2.bf16.msra.mxu0 %v825
        %885 = vmatprep.subr.bf16.mxu0 0
        %886 = vmatpush2.bf16.msra.mxu0 %v824
        %887 = vmatprep.subr.bf16.mxu0 0
        %888 = vmatpush2.bf16.msra.mxu0 %v823
        %889 = vmatprep.subr.bf16.mxu0 0
        %890 = vmatpush2.bf16.msra.mxu0 %v822
        %891 = vmatprep.subr.bf16.mxu0 0
        %892 = vmatpush2.bf16.msra.mxu0 %v821
        %893 = vmatprep.mubr.bf16.mxu0 %v709
        %894 = vmatmul.mubr.bf16.gmra.mxu0 %v708
        %v895 = vpop.f32.mrf.mxu0
        %v896 = vadd.f32 %v715, %v895
        %v897 = vpop.f32.mrf.mxu0
        %v898 = vpop.f32.mrf.mxu0
        %v899 = vadd.f32 %v715, %v898
        %v900 = vpop.f32.mrf.mxu0
        %901 = vdwg.mxu0
        %902 = vmatprep.subr.bf16.mxu0 0
        %903 = vmatpush1.bf16.msra.mxu0 %v836
        %904 = vmatprep.subr.bf16.mxu0 0
        %905 = vmatpush1.bf16.msra.mxu0 %v835
        %906 = vmatprep.subr.bf16.mxu0 0
        %907 = vmatpush1.bf16.msra.mxu0 %v834
        %908 = vmatprep.subr.bf16.mxu0 0
        %909 = vmatpush1.bf16.msra.mxu0 %v833
        %910 = vmatprep.subr.bf16.mxu0 0
        %911 = vmatpush1.bf16.msra.mxu0 %v832
        %912 = vmatprep.subr.bf16.mxu0 0
        %913 = vmatpush1.bf16.msra.mxu0 %v831
        %914 = vmatprep.subr.bf16.mxu0 0
        %915 = vmatpush1.bf16.msra.mxu0 %v830
        %916 = vmatprep.subr.bf16.mxu0 0
        %917 = vmatpush1.bf16.msra.mxu0 %v829
        %918 = vmatprep.subr.bf16.mxu0 0
        %919 = vmatpush2.bf16.msra.mxu0 0
        %920 = vmatprep.subr.bf16.mxu0 0
        %921 = vmatpush2.bf16.msra.mxu0 0
        %922 = vmatprep.subr.bf16.mxu0 0
        %923 = vmatpush2.bf16.msra.mxu0 0
        %924 = vmatprep.subr.bf16.mxu0 0
        %925 = vmatpush2.bf16.msra.mxu0 0
        %926 = vmatprep.subr.bf16.mxu0 0
        %927 = vmatpush2.bf16.msra.mxu0 0
        %928 = vmatprep.subr.bf16.mxu0 0
        %929 = vmatpush2.bf16.msra.mxu0 0
        %930 = vmatprep.subr.bf16.mxu0 0
        %931 = vmatpush2.bf16.msra.mxu0 0
        %932 = vmatprep.subr.bf16.mxu0 0
        %933 = vmatpush2.bf16.msra.mxu0 0
        %934 = vmatprep.mubr.bf16.mxu0 0
        %935 = vmatmul.mubr.bf16.gmra.mxu0 %v710
        %v936 = vpop.f32.mrf.mxu0
        %v937 = vadd.f32 %v896, %v936
        %v938 = vpop.f32.mrf.mxu0
        %v939 = vpop.f32.mrf.mxu0
        %v940 = vadd.f32 %v899, %v939
        %v941 = vpop.f32.mrf.mxu0
        %942 = vdwg.mxu0
        %v943 = vld [vmem:[#allocation2 + $0x1] sm:$0xff]
        %v944 = vld [vmem:[#allocation2 + $0x9] sm:$0xff]
        %v945 = vpack.c.bf16 %v944, %v943
        %v946 = vld [vmem:[%s5] sm:$0xf]
        %v947 = vld [vmem:[%s5 + $0x4] sm:$0xf]
        %v948 = vld [vmem:[%s5 + $0x8] sm:$0xf]
        %v949 = vld [vmem:[%s5 + $0xc] sm:$0xf]
        %v950 = vld [vmem:[%s5 + $0x10] sm:$0xf]
        %v951 = vld [vmem:[%s5 + $0x14] sm:$0xf]
        %v952 = vld [vmem:[%s5 + $0x18] sm:$0xf]
        %v953 = vld [vmem:[%s5 + $0x1c] sm:$0xf]
        %v954 = vld [vmem:[%s5 + $0x20] sm:$0xf]
        %v955 = vld [vmem:[%s5 + $0x24] sm:$0xf]
        %v956 = vld [vmem:[%s5 + $0x28] sm:$0xf]
        %v957 = vld [vmem:[%s5 + $0x2c] sm:$0xf]
        %v958 = vld [vmem:[%s5 + $0x30] sm:$0xf]
        %v959 = vld [vmem:[%s5 + $0x34] sm:$0xf]
        %v960 = vld [vmem:[%s5 + $0x38] sm:$0xf]
        %v961 = vld [vmem:[%s5 + $0x3c] sm:$0xf]
        %v962 = vld [vmem:[%s6] sm:$0x1]
        %v964 = vlaneseq
        %v965 = vshrl.u32 %v964, 7
        %v966 = vsub.s32 0, %v965
        %v967 = vrot.slane %v962, %v966
        %v985 = vunpack.c.l.b16 %v946
        %v986 = vunpack.c.l.b16 %v947
        %v987 = vunpack.c.l.b16 %v948
        %v988 = vunpack.c.l.b16 %v949
        %v989 = vunpack.c.l.b16 %v950
        %v990 = vunpack.c.l.b16 %v951
        %v991 = vunpack.c.l.b16 %v952
        %v992 = vunpack.c.l.b16 %v953
        %v993 = vunpack.c.l.b16 %v954
        %v994 = vunpack.c.l.b16 %v955
        %v995 = vunpack.c.l.b16 %v956
        %v996 = vunpack.c.l.b16 %v957
        %v997 = vunpack.c.l.b16 %v958
        %v998 = vunpack.c.l.b16 %v959
        %v999 = vunpack.c.l.b16 %v960
        %v1000 = vunpack.c.l.b16 %v961
        %v1001 = vpack.c.b16 %v986, %v985
        %v1002 = vpack.c.b16 %v988, %v987
        %v1003 = vpack.c.b16 %v990, %v989
        %v1004 = vpack.c.b16 %v992, %v991
        %v1005 = vpack.c.b16 %v994, %v993
        %v1006 = vpack.c.b16 %v996, %v995
        %v1007 = vpack.c.b16 %v998, %v997
        %v1008 = vpack.c.b16 %v1000, %v999
        %1017 = vmatprep.subr.bf16.mxu0 0
        %1018 = vmatpush1.bf16.msra.mxu0 %v1008
        %1019 = vmatprep.subr.bf16.mxu0 0
        %1020 = vmatpush1.bf16.msra.mxu0 %v1007
        %1021 = vmatprep.subr.bf16.mxu0 0
        %1022 = vmatpush1.bf16.msra.mxu0 %v1006
        %1023 = vmatprep.subr.bf16.mxu0 0
        %1024 = vmatpush1.bf16.msra.mxu0 %v1005
        %1025 = vmatprep.subr.bf16.mxu0 0
        %1026 = vmatpush1.bf16.msra.mxu0 %v1004
        %1027 = vmatprep.subr.bf16.mxu0 0
        %1028 = vmatpush1.bf16.msra.mxu0 %v1003
        %1029 = vmatprep.subr.bf16.mxu0 0
        %1030 = vmatpush1.bf16.msra.mxu0 %v1002
        %1031 = vmatprep.subr.bf16.mxu0 0
        %1032 = vmatpush1.bf16.msra.mxu0 %v1001
        %1033 = vmatprep.subr.bf16.mxu0 0
        %1034 = vmatpush2.bf16.msra.mxu0 0
        %1035 = vmatprep.subr.bf16.mxu0 0
        %1036 = vmatpush2.bf16.msra.mxu0 0
        %1037 = vmatprep.subr.bf16.mxu0 0
        %1038 = vmatpush2.bf16.msra.mxu0 0
        %1039 = vmatprep.subr.bf16.mxu0 0
        %1040 = vmatpush2.bf16.msra.mxu0 0
        %1041 = vmatprep.subr.bf16.mxu0 0
        %1042 = vmatpush2.bf16.msra.mxu0 0
        %1043 = vmatprep.subr.bf16.mxu0 0
        %1044 = vmatpush2.bf16.msra.mxu0 0
        %1045 = vmatprep.subr.bf16.mxu0 0
        %1046 = vmatpush2.bf16.msra.mxu0 0
        %1047 = vmatprep.subr.bf16.mxu0 0
        %1048 = vmatpush2.bf16.msra.mxu0 0
        %1049 = vmatprep.mubr.bf16.mxu0 0
        %1050 = vmatmul.mubr.bf16.gmra.mxu0 %v945
        %v1051 = vpop.f32.mrf.mxu0
        %v1052 = vadd.f32 %v967, %v1051
        %v1053 = vpop.f32.mrf.mxu0
        %v1054 = vpop.f32.mrf.mxu0
        %v1055 = vadd.f32 %v967, %v1054
        %v1056 = vpop.f32.mrf.mxu0
        %1057 = vdwg.mxu0
        %v1058 = vadd.f32 %v937, %v1052
        %v1059 = vadd.f32 %v940, %v1055
        %v1060 = vmax.f32 %v1058, 0.0
        %v1061 = vmax.f32 %v1059, 0.0
        %1062 = vst [vmem:[#allocation3 + $0x1] sm:$0xff] %v1060
        %1063 = vst [vmem:[#allocation3 + $0x9] sm:$0xff] %v1061
        %v1064 = vld [vmem:[#allocation5] sm:$0xf]
        %v1065 = vld [vmem:[#allocation5 + $0x4] sm:$0xf]
        %v1066 = vld [vmem:[#allocation5 + $0x8] sm:$0xf]
        %v1067 = vld [vmem:[#allocation5 + $0xc] sm:$0xf]
        %v1068 = vld [vmem:[#allocation5 + $0x10] sm:$0xf]
        %v1069 = vld [vmem:[#allocation5 + $0x14] sm:$0xf]
        %v1070 = vld [vmem:[#allocation5 + $0x18] sm:$0xf]
        %v1071 = vld [vmem:[#allocation5 + $0x1c] sm:$0xf]
        %v1072 = vld [vmem:[#allocation5 + $0x20] sm:$0xf]
        %v1073 = vld [vmem:[#allocation5 + $0x24] sm:$0xf]
        %v1074 = vld [vmem:[#allocation5 + $0x28] sm:$0xf]
        %v1075 = vld [vmem:[#allocation5 + $0x2c] sm:$0xf]
        %v1076 = vld [vmem:[#allocation5 + $0x30] sm:$0xf]
        %v1077 = vld [vmem:[#allocation5 + $0x34] sm:$0xf]
        %v1078 = vld [vmem:[#allocation5 + $0x38] sm:$0xf]
        %v1079 = vld [vmem:[#allocation5 + $0x3c] sm:$0xf]
        %v1080 = vld [vmem:[#allocation5 + $0x40] sm:$0xf]
        %v1081 = vld [vmem:[#allocation5 + $0x44] sm:$0xf]
        %v1082 = vld [vmem:[#allocation5 + $0x48] sm:$0xf]
        %v1083 = vld [vmem:[#allocation5 + $0x4c] sm:$0xf]
        %v1084 = vld [vmem:[#allocation5 + $0x50] sm:$0xf]
        %v1085 = vld [vmem:[#allocation5 + $0x54] sm:$0xf]
        %v1086 = vld [vmem:[#allocation5 + $0x58] sm:$0xf]
        %v1087 = vld [vmem:[#allocation5 + $0x5c] sm:$0xf]
        %v1088 = vld [vmem:[#allocation5 + $0x60] sm:$0xf]
        %v1089 = vld [vmem:[#allocation5 + $0x64] sm:$0xf]
        %v1090 = vld [vmem:[#allocation5 + $0x68] sm:$0xf]
        %v1091 = vld [vmem:[#allocation5 + $0x6c] sm:$0xf]
        %v1092 = vld [vmem:[#allocation5 + $0x70] sm:$0xf]
        %v1093 = vld [vmem:[#allocation5 + $0x74] sm:$0xf]
        %v1094 = vld [vmem:[#allocation5 + $0x78] sm:$0xf]
        %v1095 = vld [vmem:[#allocation5 + $0x7c] sm:$0xf]
        %v1096 = vld [vmem:[#allocation5 + $0x80] sm:$0xf]
        %v1097 = vld [vmem:[#allocation5 + $0x84] sm:$0xf]
        %v1098 = vld [vmem:[#allocation5 + $0x88] sm:$0xf]
        %v1099 = vld [vmem:[#allocation5 + $0x8c] sm:$0xf]
        %v1100 = vld [vmem:[#allocation5 + $0x90] sm:$0xf]
        %v1101 = vld [vmem:[#allocation5 + $0x94] sm:$0xf]
        %v1102 = vld [vmem:[#allocation5 + $0x98] sm:$0xf]
        %v1103 = vld [vmem:[#allocation5 + $0x9c] sm:$0xf]
        %v1104 = vld [vmem:[#allocation5 + $0xa0] sm:$0xf]
        %v1105 = vld [vmem:[#allocation5 + $0xa4] sm:$0xf]
        %v1106 = vld [vmem:[#allocation5 + $0xa8] sm:$0xf]
        %v1107 = vld [vmem:[#allocation5 + $0xac] sm:$0xf]
        %v1108 = vld [vmem:[#allocation5 + $0xb0] sm:$0xf]
        %v1109 = vld [vmem:[#allocation5 + $0xb4] sm:$0xf]
        %v1110 = vld [vmem:[#allocation5 + $0xb8] sm:$0xf]
        %v1111 = vld [vmem:[#allocation5 + $0xbc] sm:$0xf]
        %v1112 = vld [vmem:[%s8] sm:$0x1]
        %v1113 = vld [vmem:[#allocation3] sm:$0xff]
        %v1114 = vld [vmem:[#allocation3 + $0x8] sm:$0xff]
        %v1115 = vld [vmem:[#allocation3 + $0x1] sm:$0xff]
        %v1116 = vld [vmem:[#allocation3 + $0x9] sm:$0xff]
        %v1117 = vld [vmem:[#allocation3 + $0x2] sm:$0xff]
        %v1118 = vld [vmem:[#allocation3 + $0xa] sm:$0xff]
        %v1119 = vpack.c.bf16 %v1114, %v1113
        %v1120 = vpack.c.bf16 %v1116, %v1115
        %v1121 = vpack.c.bf16 %v1118, %v1117
        %v1123 = vlaneseq
        %v1124 = vshrl.u32 %v1123, 7
        %v1125 = vsub.s32 0, %v1124
        %v1126 = vrot.slane %v1112, %v1125
        %v1176 = vunpack.c.l.b16 %v1064
        %v1177 = vunpack.c.l.b16 %v1065
        %v1178 = vunpack.c.l.b16 %v1066
        %v1179 = vunpack.c.l.b16 %v1067
        %v1180 = vunpack.c.l.b16 %v1068
        %v1181 = vunpack.c.l.b16 %v1069
        %v1182 = vunpack.c.l.b16 %v1070
        %v1183 = vunpack.c.l.b16 %v1071
        %v1184 = vunpack.c.l.b16 %v1072
        %v1185 = vunpack.c.l.b16 %v1073
        %v1186 = vunpack.c.l.b16 %v1074
        %v1187 = vunpack.c.l.b16 %v1075
        %v1188 = vunpack.c.l.b16 %v1076
        %v1189 = vunpack.c.l.b16 %v1077
        %v1190 = vunpack.c.l.b16 %v1078
        %v1191 = vunpack.c.l.b16 %v1079
        %v1192 = vunpack.c.l.b16 %v1080
        %v1193 = vunpack.c.l.b16 %v1081
        %v1194 = vunpack.c.l.b16 %v1082
        %v1195 = vunpack.c.l.b16 %v1083
        %v1196 = vunpack.c.l.b16 %v1084
        %v1197 = vunpack.c.l.b16 %v1085
        %v1198 = vunpack.c.l.b16 %v1086
        %v1199 = vunpack.c.l.b16 %v1087
        %v1200 = vunpack.c.l.b16 %v1088
        %v1201 = vunpack.c.l.b16 %v1089
        %v1202 = vunpack.c.l.b16 %v1090
        %v1203 = vunpack.c.l.b16 %v1091
        %v1204 = vunpack.c.l.b16 %v1092
        %v1205 = vunpack.c.l.b16 %v1093
        %v1206 = vunpack.c.l.b16 %v1094
        %v1207 = vunpack.c.l.b16 %v1095
        %v1208 = vunpack.c.l.b16 %v1096
        %v1209 = vunpack.c.l.b16 %v1097
        %v1210 = vunpack.c.l.b16 %v1098
        %v1211 = vunpack.c.l.b16 %v1099
        %v1212 = vunpack.c.l.b16 %v1100
        %v1213 = vunpack.c.l.b16 %v1101
        %v1214 = vunpack.c.l.b16 %v1102
        %v1215 = vunpack.c.l.b16 %v1103
        %v1216 = vunpack.c.l.b16 %v1104
        %v1217 = vunpack.c.l.b16 %v1105
        %v1218 = vunpack.c.l.b16 %v1106
        %v1219 = vunpack.c.l.b16 %v1107
        %v1220 = vunpack.c.l.b16 %v1108
        %v1221 = vunpack.c.l.b16 %v1109
        %v1222 = vunpack.c.l.b16 %v1110
        %v1223 = vunpack.c.l.b16 %v1111
        %v1224 = vpack.c.b16 %v1177, %v1176
        %v1225 = vpack.c.b16 %v1179, %v1178
        %v1226 = vpack.c.b16 %v1181, %v1180
        %v1227 = vpack.c.b16 %v1183, %v1182
        %v1228 = vpack.c.b16 %v1185, %v1184
        %v1229 = vpack.c.b16 %v1187, %v1186
        %v1230 = vpack.c.b16 %v1189, %v1188
        %v1231 = vpack.c.b16 %v1191, %v1190
        %v1232 = vpack.c.b16 %v1193, %v1192
        %v1233 = vpack.c.b16 %v1195, %v1194
        %v1234 = vpack.c.b16 %v1197, %v1196
        %v1235 = vpack.c.b16 %v1199, %v1198
        %v1236 = vpack.c.b16 %v1201, %v1200
        %v1237 = vpack.c.b16 %v1203, %v1202
        %v1238 = vpack.c.b16 %v1205, %v1204
        %v1239 = vpack.c.b16 %v1207, %v1206
        %v1240 = vpack.c.b16 %v1209, %v1208
        %v1241 = vpack.c.b16 %v1211, %v1210
        %v1242 = vpack.c.b16 %v1213, %v1212
        %v1243 = vpack.c.b16 %v1215, %v1214
        %v1244 = vpack.c.b16 %v1217, %v1216
        %v1245 = vpack.c.b16 %v1219, %v1218
        %v1246 = vpack.c.b16 %v1221, %v1220
        %v1247 = vpack.c.b16 %v1223, %v1222
        %1272 = vmatprep.subr.bf16.mxu0 0
        %1273 = vmatpush1.bf16.msra.mxu0 %v1231
        %1274 = vmatprep.subr.bf16.mxu0 0
        %1275 = vmatpush1.bf16.msra.mxu0 %v1230
        %1276 = vmatprep.subr.bf16.mxu0 0
        %1277 = vmatpush1.bf16.msra.mxu0 %v1229
        %1278 = vmatprep.subr.bf16.mxu0 0
        %1279 = vmatpush1.bf16.msra.mxu0 %v1228
        %1280 = vmatprep.subr.bf16.mxu0 0
        %1281 = vmatpush1.bf16.msra.mxu0 %v1227
        %1282 = vmatprep.subr.bf16.mxu0 0
        %1283 = vmatpush1.bf16.msra.mxu0 %v1226
        %1284 = vmatprep.subr.bf16.mxu0 0
        %1285 = vmatpush1.bf16.msra.mxu0 %v1225
        %1286 = vmatprep.subr.bf16.mxu0 0
        %1287 = vmatpush1.bf16.msra.mxu0 %v1224
        %1288 = vmatprep.subr.bf16.mxu0 0
        %1289 = vmatpush2.bf16.msra.mxu0 %v1239
        %1290 = vmatprep.subr.bf16.mxu0 0
        %1291 = vmatpush2.bf16.msra.mxu0 %v1238
        %1292 = vmatprep.subr.bf16.mxu0 0
        %1293 = vmatpush2.bf16.msra.mxu0 %v1237
        %1294 = vmatprep.subr.bf16.mxu0 0
        %1295 = vmatpush2.bf16.msra.mxu0 %v1236
        %1296 = vmatprep.subr.bf16.mxu0 0
        %1297 = vmatpush2.bf16.msra.mxu0 %v1235
        %1298 = vmatprep.subr.bf16.mxu0 0
        %1299 = vmatpush2.bf16.msra.mxu0 %v1234
        %1300 = vmatprep.subr.bf16.mxu0 0
        %1301 = vmatpush2.bf16.msra.mxu0 %v1233
        %1302 = vmatprep.subr.bf16.mxu0 0
        %1303 = vmatpush2.bf16.msra.mxu0 %v1232
        %1304 = vmatprep.mubr.bf16.mxu0 %v1120
        %1305 = vmatmul.mubr.bf16.gmra.mxu0 %v1119
        %v1306 = vpop.f32.mrf.mxu0
        %v1307 = vadd.f32 %v1126, %v1306
        %v1308 = vpop.f32.mrf.mxu0
        %v1309 = vpop.f32.mrf.mxu0
        %v1310 = vadd.f32 %v1126, %v1309
        %v1311 = vpop.f32.mrf.mxu0
        %1312 = vdwg.mxu0
        %1313 = vmatprep.subr.bf16.mxu0 0
        %1314 = vmatpush1.bf16.msra.mxu0 %v1247
        %1315 = vmatprep.subr.bf16.mxu0 0
        %1316 = vmatpush1.bf16.msra.mxu0 %v1246
        %1317 = vmatprep.subr.bf16.mxu0 0
        %1318 = vmatpush1.bf16.msra.mxu0 %v1245
        %1319 = vmatprep.subr.bf16.mxu0 0
        %1320 = vmatpush1.bf16.msra.mxu0 %v1244
        %1321 = vmatprep.subr.bf16.mxu0 0
        %1322 = vmatpush1.bf16.msra.mxu0 %v1243
        %1323 = vmatprep.subr.bf16.mxu0 0
        %1324 = vmatpush1.bf16.msra.mxu0 %v1242
        %1325 = vmatprep.subr.bf16.mxu0 0
        %1326 = vmatpush1.bf16.msra.mxu0 %v1241
        %1327 = vmatprep.subr.bf16.mxu0 0
        %1328 = vmatpush1.bf16.msra.mxu0 %v1240
        %1329 = vmatprep.subr.bf16.mxu0 0
        %1330 = vmatpush2.bf16.msra.mxu0 0
        %1331 = vmatprep.subr.bf16.mxu0 0
        %1332 = vmatpush2.bf16.msra.mxu0 0
        %1333 = vmatprep.subr.bf16.mxu0 0
        %1334 = vmatpush2.bf16.msra.mxu0 0
        %1335 = vmatprep.subr.bf16.mxu0 0
        %1336 = vmatpush2.bf16.msra.mxu0 0
        %1337 = vmatprep.subr.bf16.mxu0 0
        %1338 = vmatpush2.bf16.msra.mxu0 0
        %1339 = vmatprep.subr.bf16.mxu0 0
        %1340 = vmatpush2.bf16.msra.mxu0 0
        %1341 = vmatprep.subr.bf16.mxu0 0
        %1342 = vmatpush2.bf16.msra.mxu0 0
        %1343 = vmatprep.subr.bf16.mxu0 0
        %1344 = vmatpush2.bf16.msra.mxu0 0
        %1345 = vmatprep.mubr.bf16.mxu0 0
        %1346 = vmatmul.mubr.bf16.gmra.mxu0 %v1121
        %v1347 = vpop.f32.mrf.mxu0
        %v1348 = vadd.f32 %v1307, %v1347
        %v1349 = vpop.f32.mrf.mxu0
        %v1350 = vpop.f32.mrf.mxu0
        %v1351 = vadd.f32 %v1310, %v1350
        %v1352 = vpop.f32.mrf.mxu0
        %1353 = vdwg.mxu0
        %v1354 = vmax.f32 %v1348, 0.0
        %v1355 = vmax.f32 %v1351, 0.0
        %1356 = vst [vmem:[#allocation4 + $0x1] sm:$0xff] %v1354
        %1357 = vst [vmem:[#allocation4 + $0x9] sm:$0xff] %v1355
        %s1358 = scalar_lea.vmem [#allocation5], 192
        %v1359 = vld [vmem:[%s1358] sm:$0xf]
        %v1360 = vld [vmem:[%s1358 + $0x4] sm:$0xf]
        %v1361 = vld [vmem:[%s1358 + $0x8] sm:$0xf]
        %v1362 = vld [vmem:[%s1358 + $0xc] sm:$0xf]
        %v1363 = vld [vmem:[%s1358 + $0x10] sm:$0xf]
        %v1364 = vld [vmem:[%s1358 + $0x14] sm:$0xf]
        %v1365 = vld [vmem:[%s1358 + $0x18] sm:$0xf]
        %v1366 = vld [vmem:[%s1358 + $0x1c] sm:$0xf]
        %v1367 = vld [vmem:[%s1358 + $0x20] sm:$0xf]
        %v1368 = vld [vmem:[%s1358 + $0x24] sm:$0xf]
        %v1369 = vld [vmem:[%s1358 + $0x28] sm:$0xf]
        %v1370 = vld [vmem:[%s1358 + $0x2c] sm:$0xf]
        %v1371 = vld [vmem:[%s1358 + $0x30] sm:$0xf]
        %v1372 = vld [vmem:[%s1358 + $0x34] sm:$0xf]
        %v1373 = vld [vmem:[%s1358 + $0x38] sm:$0xf]
        %v1374 = vld [vmem:[%s1358 + $0x3c] sm:$0xf]
        %v1375 = vld [vmem:[%s1358 + $0x40] sm:$0xf]
        %v1376 = vld [vmem:[%s1358 + $0x44] sm:$0xf]
        %v1377 = vld [vmem:[%s1358 + $0x48] sm:$0xf]
        %v1378 = vld [vmem:[%s1358 + $0x4c] sm:$0xf]
        %v1379 = vld [vmem:[%s1358 + $0x50] sm:$0xf]
        %v1380 = vld [vmem:[%s1358 + $0x54] sm:$0xf]
        %v1381 = vld [vmem:[%s1358 + $0x58] sm:$0xf]
        %v1382 = vld [vmem:[%s1358 + $0x5c] sm:$0xf]
        %v1383 = vld [vmem:[%s1358 + $0x60] sm:$0xf]
        %v1384 = vld [vmem:[%s1358 + $0x64] sm:$0xf]
        %v1385 = vld [vmem:[%s1358 + $0x68] sm:$0xf]
        %v1386 = vld [vmem:[%s1358 + $0x6c] sm:$0xf]
        %v1387 = vld [vmem:[%s1358 + $0x70] sm:$0xf]
        %v1388 = vld [vmem:[%s1358 + $0x74] sm:$0xf]
        %v1389 = vld [vmem:[%s1358 + $0x78] sm:$0xf]
        %v1390 = vld [vmem:[%s1358 + $0x7c] sm:$0xf]
        %v1391 = vld [vmem:[%s1358 + $0x80] sm:$0xf]
        %v1392 = vld [vmem:[%s1358 + $0x84] sm:$0xf]
        %v1393 = vld [vmem:[%s1358 + $0x88] sm:$0xf]
        %v1394 = vld [vmem:[%s1358 + $0x8c] sm:$0xf]
        %v1395 = vld [vmem:[%s1358 + $0x90] sm:$0xf]
        %v1396 = vld [vmem:[%s1358 + $0x94] sm:$0xf]
        %v1397 = vld [vmem:[%s1358 + $0x98] sm:$0xf]
        %v1398 = vld [vmem:[%s1358 + $0x9c] sm:$0xf]
        %v1399 = vld [vmem:[%s1358 + $0xa0] sm:$0xf]
        %v1400 = vld [vmem:[%s1358 + $0xa4] sm:$0xf]
        %v1401 = vld [vmem:[%s1358 + $0xa8] sm:$0xf]
        %v1402 = vld [vmem:[%s1358 + $0xac] sm:$0xf]
        %v1403 = vld [vmem:[%s1358 + $0xb0] sm:$0xf]
        %v1404 = vld [vmem:[%s1358 + $0xb4] sm:$0xf]
        %v1405 = vld [vmem:[%s1358 + $0xb8] sm:$0xf]
        %v1406 = vld [vmem:[%s1358 + $0xbc] sm:$0xf]
        %s1407 = scalar_lea.vmem %s8, 1
        %v1408 = vld [vmem:[%s1407] sm:$0x1]
        %v1409 = vld [vmem:[#allocation4] sm:$0xff]
        %v1410 = vld [vmem:[#allocation4 + $0x8] sm:$0xff]
        %v1411 = vld [vmem:[#allocation4 + $0x1] sm:$0xff]
        %v1412 = vld [vmem:[#allocation4 + $0x9] sm:$0xff]
        %v1413 = vld [vmem:[#allocation4 + $0x2] sm:$0xff]
        %v1414 = vld [vmem:[#allocation4 + $0xa] sm:$0xff]
        %v1415 = vpack.c.bf16 %v1410, %v1409
        %v1416 = vpack.c.bf16 %v1412, %v1411
        %v1417 = vpack.c.bf16 %v1414, %v1413
        %v1419 = vlaneseq
        %v1420 = vshrl.u32 %v1419, 7
        %v1421 = vsub.s32 0, %v1420
        %v1422 = vrot.slane %v1408, %v1421
        %v1472 = vunpack.c.l.b16 %v1359
        %v1473 = vunpack.c.l.b16 %v1360
        %v1474 = vunpack.c.l.b16 %v1361
        %v1475 = vunpack.c.l.b16 %v1362
        %v1476 = vunpack.c.l.b16 %v1363
        %v1477 = vunpack.c.l.b16 %v1364
        %v1478 = vunpack.c.l.b16 %v1365
        %v1479 = vunpack.c.l.b16 %v1366
        %v1480 = vunpack.c.l.b16 %v1367
        %v1481 = vunpack.c.l.b16 %v1368
        %v1482 = vunpack.c.l.b16 %v1369
        %v1483 = vunpack.c.l.b16 %v1370
        %v1484 = vunpack.c.l.b16 %v1371
        %v1485 = vunpack.c.l.b16 %v1372
        %v1486 = vunpack.c.l.b16 %v1373
        %v1487 = vunpack.c.l.b16 %v1374
        %v1488 = vunpack.c.l.b16 %v1375
        %v1489 = vunpack.c.l.b16 %v1376
        %v1490 = vunpack.c.l.b16 %v1377
        %v1491 = vunpack.c.l.b16 %v1378
        %v1492 = vunpack.c.l.b16 %v1379
        %v1493 = vunpack.c.l.b16 %v1380
        %v1494 = vunpack.c.l.b16 %v1381
        %v1495 = vunpack.c.l.b16 %v1382
        %v1496 = vunpack.c.l.b16 %v1383
        %v1497 = vunpack.c.l.b16 %v1384
        %v1498 = vunpack.c.l.b16 %v1385
        %v1499 = vunpack.c.l.b16 %v1386
        %v1500 = vunpack.c.l.b16 %v1387
        %v1501 = vunpack.c.l.b16 %v1388
        %v1502 = vunpack.c.l.b16 %v1389
        %v1503 = vunpack.c.l.b16 %v1390
        %v1504 = vunpack.c.l.b16 %v1391
        %v1505 = vunpack.c.l.b16 %v1392
        %v1506 = vunpack.c.l.b16 %v1393
        %v1507 = vunpack.c.l.b16 %v1394
        %v1508 = vunpack.c.l.b16 %v1395
        %v1509 = vunpack.c.l.b16 %v1396
        %v1510 = vunpack.c.l.b16 %v1397
        %v1511 = vunpack.c.l.b16 %v1398
        %v1512 = vunpack.c.l.b16 %v1399
        %v1513 = vunpack.c.l.b16 %v1400
        %v1514 = vunpack.c.l.b16 %v1401
        %v1515 = vunpack.c.l.b16 %v1402
        %v1516 = vunpack.c.l.b16 %v1403
        %v1517 = vunpack.c.l.b16 %v1404
        %v1518 = vunpack.c.l.b16 %v1405
        %v1519 = vunpack.c.l.b16 %v1406
        %v1520 = vpack.c.b16 %v1473, %v1472
        %v1521 = vpack.c.b16 %v1475, %v1474
        %v1522 = vpack.c.b16 %v1477, %v1476
        %v1523 = vpack.c.b16 %v1479, %v1478
        %v1524 = vpack.c.b16 %v1481, %v1480
        %v1525 = vpack.c.b16 %v1483, %v1482
        %v1526 = vpack.c.b16 %v1485, %v1484
        %v1527 = vpack.c.b16 %v1487, %v1486
        %v1528 = vpack.c.b16 %v1489, %v1488
        %v1529 = vpack.c.b16 %v1491, %v1490
        %v1530 = vpack.c.b16 %v1493, %v1492
        %v1531 = vpack.c.b16 %v1495, %v1494
        %v1532 = vpack.c.b16 %v1497, %v1496
        %v1533 = vpack.c.b16 %v1499, %v1498
        %v1534 = vpack.c.b16 %v1501, %v1500
        %v1535 = vpack.c.b16 %v1503, %v1502
        %v1536 = vpack.c.b16 %v1505, %v1504
        %v1537 = vpack.c.b16 %v1507, %v1506
        %v1538 = vpack.c.b16 %v1509, %v1508
        %v1539 = vpack.c.b16 %v1511, %v1510
        %v1540 = vpack.c.b16 %v1513, %v1512
        %v1541 = vpack.c.b16 %v1515, %v1514
        %v1542 = vpack.c.b16 %v1517, %v1516
        %v1543 = vpack.c.b16 %v1519, %v1518
        %1568 = vmatprep.subr.bf16.mxu0 0
        %1569 = vmatpush1.bf16.msra.mxu0 %v1527
        %1570 = vmatprep.subr.bf16.mxu0 0
        %1571 = vmatpush1.bf16.msra.mxu0 %v1526
        %1572 = vmatprep.subr.bf16.mxu0 0
        %1573 = vmatpush1.bf16.msra.mxu0 %v1525
        %1574 = vmatprep.subr.bf16.mxu0 0
        %1575 = vmatpush1.bf16.msra.mxu0 %v1524
        %1576 = vmatprep.subr.bf16.mxu0 0
        %1577 = vmatpush1.bf16.msra.mxu0 %v1523
        %1578 = vmatprep.subr.bf16.mxu0 0
        %1579 = vmatpush1.bf16.msra.mxu0 %v1522
        %1580 = vmatprep.subr.bf16.mxu0 0
        %1581 = vmatpush1.bf16.msra.mxu0 %v1521
        %1582 = vmatprep.subr.bf16.mxu0 0
        %1583 = vmatpush1.bf16.msra.mxu0 %v1520
        %1584 = vmatprep.subr.bf16.mxu0 0
        %1585 = vmatpush2.bf16.msra.mxu0 %v1535
        %1586 = vmatprep.subr.bf16.mxu0 0
        %1587 = vmatpush2.bf16.msra.mxu0 %v1534
        %1588 = vmatprep.subr.bf16.mxu0 0
        %1589 = vmatpush2.bf16.msra.mxu0 %v1533
        %1590 = vmatprep.subr.bf16.mxu0 0
        %1591 = vmatpush2.bf16.msra.mxu0 %v1532
        %1592 = vmatprep.subr.bf16.mxu0 0
        %1593 = vmatpush2.bf16.msra.mxu0 %v1531
        %1594 = vmatprep.subr.bf16.mxu0 0
        %1595 = vmatpush2.bf16.msra.mxu0 %v1530
        %1596 = vmatprep.subr.bf16.mxu0 0
        %1597 = vmatpush2.bf16.msra.mxu0 %v1529
        %1598 = vmatprep.subr.bf16.mxu0 0
        %1599 = vmatpush2.bf16.msra.mxu0 %v1528
        %1600 = vmatprep.mubr.bf16.mxu0 %v1416
        %1601 = vmatmul.mubr.bf16.gmra.mxu0 %v1415
        %v1602 = vpop.f32.mrf.mxu0
        %v1603 = vadd.f32 %v1422, %v1602
        %v1604 = vpop.f32.mrf.mxu0
        %v1605 = vpop.f32.mrf.mxu0
        %v1606 = vadd.f32 %v1422, %v1605
        %v1607 = vpop.f32.mrf.mxu0
        %1608 = vdwg.mxu0
        %1609 = vmatprep.subr.bf16.mxu0 0
        %1610 = vmatpush1.bf16.msra.mxu0 %v1543
        %1611 = vmatprep.subr.bf16.mxu0 0
        %1612 = vmatpush1.bf16.msra.mxu0 %v1542
        %1613 = vmatprep.subr.bf16.mxu0 0
        %1614 = vmatpush1.bf16.msra.mxu0 %v1541
        %1615 = vmatprep.subr.bf16.mxu0 0
        %1616 = vmatpush1.bf16.msra.mxu0 %v1540
        %1617 = vmatprep.subr.bf16.mxu0 0
        %1618 = vmatpush1.bf16.msra.mxu0 %v1539
        %1619 = vmatprep.subr.bf16.mxu0 0
        %1620 = vmatpush1.bf16.msra.mxu0 %v1538
        %1621 = vmatprep.subr.bf16.mxu0 0
        %1622 = vmatpush1.bf16.msra.mxu0 %v1537
        %1623 = vmatprep.subr.bf16.mxu0 0
        %1624 = vmatpush1.bf16.msra.mxu0 %v1536
        %1625 = vmatprep.subr.bf16.mxu0 0
        %1626 = vmatpush2.bf16.msra.mxu0 0
        %1627 = vmatprep.subr.bf16.mxu0 0
        %1628 = vmatpush2.bf16.msra.mxu0 0
        %1629 = vmatprep.subr.bf16.mxu0 0
        %1630 = vmatpush2.bf16.msra.mxu0 0
        %1631 = vmatprep.subr.bf16.mxu0 0
        %1632 = vmatpush2.bf16.msra.mxu0 0
        %1633 = vmatprep.subr.bf16.mxu0 0
        %1634 = vmatpush2.bf16.msra.mxu0 0
        %1635 = vmatprep.subr.bf16.mxu0 0
        %1636 = vmatpush2.bf16.msra.mxu0 0
        %1637 = vmatprep.subr.bf16.mxu0 0
        %1638 = vmatpush2.bf16.msra.mxu0 0
        %1639 = vmatprep.subr.bf16.mxu0 0
        %1640 = vmatpush2.bf16.msra.mxu0 0
        %1641 = vmatprep.mubr.bf16.mxu0 0
        %1642 = vmatmul.mubr.bf16.gmra.mxu0 %v1417
        %v1643 = vpop.f32.mrf.mxu0
        %v1644 = vadd.f32 %v1603, %v1643
        %v1645 = vpop.f32.mrf.mxu0
        %v1646 = vpop.f32.mrf.mxu0
        %v1647 = vadd.f32 %v1606, %v1646
        %v1648 = vpop.f32.mrf.mxu0
        %1649 = vdwg.mxu0
        %v1650 = vld [vmem:[#allocation3 + $0x1] sm:$0xff]
        %v1651 = vld [vmem:[#allocation3 + $0x9] sm:$0xff]
        %v1652 = vadd.f32 %v1644, %v1650
        %v1653 = vadd.f32 %v1647, %v1651
        %v1654 = vmax.f32 %v1652, 0.0
        %v1655 = vmax.f32 %v1653, 0.0
        %1656 = vst [vmem:[#allocation3 + $0x1] sm:$0xff] %v1654
        %1657 = vst [vmem:[#allocation3 + $0x9] sm:$0xff] %v1655
        %s1658 = scalar_lea.vmem [#allocation5], 384
        %v1659 = vld [vmem:[%s1658] sm:$0xf]
        %v1660 = vld [vmem:[%s1658 + $0x4] sm:$0xf]
        %v1661 = vld [vmem:[%s1658 + $0x8] sm:$0xf]
        %v1662 = vld [vmem:[%s1658 + $0xc] sm:$0xf]
        %v1663 = vld [vmem:[%s1658 + $0x10] sm:$0xf]
        %v1664 = vld [vmem:[%s1658 + $0x14] sm:$0xf]
        %v1665 = vld [vmem:[%s1658 + $0x18] sm:$0xf]
        %v1666 = vld [vmem:[%s1658 + $0x1c] sm:$0xf]
        %v1667 = vld [vmem:[%s1658 + $0x20] sm:$0xf]
        %v1668 = vld [vmem:[%s1658 + $0x24] sm:$0xf]
        %v1669 = vld [vmem:[%s1658 + $0x28] sm:$0xf]
        %v1670 = vld [vmem:[%s1658 + $0x2c] sm:$0xf]
        %v1671 = vld [vmem:[%s1658 + $0x30] sm:$0xf]
        %v1672 = vld [vmem:[%s1658 + $0x34] sm:$0xf]
        %v1673 = vld [vmem:[%s1658 + $0x38] sm:$0xf]
        %v1674 = vld [vmem:[%s1658 + $0x3c] sm:$0xf]
        %v1675 = vld [vmem:[%s1658 + $0x40] sm:$0xf]
        %v1676 = vld [vmem:[%s1658 + $0x44] sm:$0xf]
        %v1677 = vld [vmem:[%s1658 + $0x48] sm:$0xf]
        %v1678 = vld [vmem:[%s1658 + $0x4c] sm:$0xf]
        %v1679 = vld [vmem:[%s1658 + $0x50] sm:$0xf]
        %v1680 = vld [vmem:[%s1658 + $0x54] sm:$0xf]
        %v1681 = vld [vmem:[%s1658 + $0x58] sm:$0xf]
        %v1682 = vld [vmem:[%s1658 + $0x5c] sm:$0xf]
        %v1683 = vld [vmem:[%s1658 + $0x60] sm:$0xf]
        %v1684 = vld [vmem:[%s1658 + $0x64] sm:$0xf]
        %v1685 = vld [vmem:[%s1658 + $0x68] sm:$0xf]
        %v1686 = vld [vmem:[%s1658 + $0x6c] sm:$0xf]
        %v1687 = vld [vmem:[%s1658 + $0x70] sm:$0xf]
        %v1688 = vld [vmem:[%s1658 + $0x74] sm:$0xf]
        %v1689 = vld [vmem:[%s1658 + $0x78] sm:$0xf]
        %v1690 = vld [vmem:[%s1658 + $0x7c] sm:$0xf]
        %v1691 = vld [vmem:[%s1658 + $0x80] sm:$0xf]
        %v1692 = vld [vmem:[%s1658 + $0x84] sm:$0xf]
        %v1693 = vld [vmem:[%s1658 + $0x88] sm:$0xf]
        %v1694 = vld [vmem:[%s1658 + $0x8c] sm:$0xf]
        %v1695 = vld [vmem:[%s1658 + $0x90] sm:$0xf]
        %v1696 = vld [vmem:[%s1658 + $0x94] sm:$0xf]
        %v1697 = vld [vmem:[%s1658 + $0x98] sm:$0xf]
        %v1698 = vld [vmem:[%s1658 + $0x9c] sm:$0xf]
        %v1699 = vld [vmem:[%s1658 + $0xa0] sm:$0xf]
        %v1700 = vld [vmem:[%s1658 + $0xa4] sm:$0xf]
        %v1701 = vld [vmem:[%s1658 + $0xa8] sm:$0xf]
        %v1702 = vld [vmem:[%s1658 + $0xac] sm:$0xf]
        %v1703 = vld [vmem:[%s1658 + $0xb0] sm:$0xf]
        %v1704 = vld [vmem:[%s1658 + $0xb4] sm:$0xf]
        %v1705 = vld [vmem:[%s1658 + $0xb8] sm:$0xf]
        %v1706 = vld [vmem:[%s1658 + $0xbc] sm:$0xf]
        %s1707 = scalar_lea.vmem %s8, 2
        %v1708 = vld [vmem:[%s1707] sm:$0x1]
        %v1709 = vld [vmem:[#allocation3] sm:$0xff]
        %v1710 = vld [vmem:[#allocation3 + $0x8] sm:$0xff]
        %v1711 = vld [vmem:[#allocation3 + $0x1] sm:$0xff]
        %v1712 = vld [vmem:[#allocation3 + $0x9] sm:$0xff]
        %v1713 = vld [vmem:[#allocation3 + $0x2] sm:$0xff]
        %v1714 = vld [vmem:[#allocation3 + $0xa] sm:$0xff]
        %v1715 = vpack.c.bf16 %v1710, %v1709
        %v1716 = vpack.c.bf16 %v1712, %v1711
        %v1717 = vpack.c.bf16 %v1714, %v1713
        %v1719 = vlaneseq
        %v1720 = vshrl.u32 %v1719, 7
        %v1721 = vsub.s32 0, %v1720
        %v1722 = vrot.slane %v1708, %v1721
        %v1772 = vunpack.c.l.b16 %v1659
        %v1773 = vunpack.c.l.b16 %v1660
        %v1774 = vunpack.c.l.b16 %v1661
        %v1775 = vunpack.c.l.b16 %v1662
        %v1776 = vunpack.c.l.b16 %v1663
        %v1777 = vunpack.c.l.b16 %v1664
        %v1778 = vunpack.c.l.b16 %v1665
        %v1779 = vunpack.c.l.b16 %v1666
        %v1780 = vunpack.c.l.b16 %v1667
        %v1781 = vunpack.c.l.b16 %v1668
        %v1782 = vunpack.c.l.b16 %v1669
        %v1783 = vunpack.c.l.b16 %v1670
        %v1784 = vunpack.c.l.b16 %v1671
        %v1785 = vunpack.c.l.b16 %v1672
        %v1786 = vunpack.c.l.b16 %v1673
        %v1787 = vunpack.c.l.b16 %v1674
        %v1788 = vunpack.c.l.b16 %v1675
        %v1789 = vunpack.c.l.b16 %v1676
        %v1790 = vunpack.c.l.b16 %v1677
        %v1791 = vunpack.c.l.b16 %v1678
        %v1792 = vunpack.c.l.b16 %v1679
        %v1793 = vunpack.c.l.b16 %v1680
        %v1794 = vunpack.c.l.b16 %v1681
        %v1795 = vunpack.c.l.b16 %v1682
        %v1796 = vunpack.c.l.b16 %v1683
        %v1797 = vunpack.c.l.b16 %v1684
        %v1798 = vunpack.c.l.b16 %v1685
        %v1799 = vunpack.c.l.b16 %v1686
        %v1800 = vunpack.c.l.b16 %v1687
        %v1801 = vunpack.c.l.b16 %v1688
        %v1802 = vunpack.c.l.b16 %v1689
        %v1803 = vunpack.c.l.b16 %v1690
        %v1804 = vunpack.c.l.b16 %v1691
        %v1805 = vunpack.c.l.b16 %v1692
        %v1806 = vunpack.c.l.b16 %v1693
        %v1807 = vunpack.c.l.b16 %v1694
        %v1808 = vunpack.c.l.b16 %v1695
        %v1809 = vunpack.c.l.b16 %v1696
        %v1810 = vunpack.c.l.b16 %v1697
        %v1811 = vunpack.c.l.b16 %v1698
        %v1812 = vunpack.c.l.b16 %v1699
        %v1813 = vunpack.c.l.b16 %v1700
        %v1814 = vunpack.c.l.b16 %v1701
        %v1815 = vunpack.c.l.b16 %v1702
        %v1816 = vunpack.c.l.b16 %v1703
        %v1817 = vunpack.c.l.b16 %v1704
        %v1818 = vunpack.c.l.b16 %v1705
        %v1819 = vunpack.c.l.b16 %v1706
        %v1820 = vpack.c.b16 %v1773, %v1772
        %v1821 = vpack.c.b16 %v1775, %v1774
        %v1822 = vpack.c.b16 %v1777, %v1776
        %v1823 = vpack.c.b16 %v1779, %v1778
        %v1824 = vpack.c.b16 %v1781, %v1780
        %v1825 = vpack.c.b16 %v1783, %v1782
        %v1826 = vpack.c.b16 %v1785, %v1784
        %v1827 = vpack.c.b16 %v1787, %v1786
        %v1828 = vpack.c.b16 %v1789, %v1788
        %v1829 = vpack.c.b16 %v1791, %v1790
        %v1830 = vpack.c.b16 %v1793, %v1792
        %v1831 = vpack.c.b16 %v1795, %v1794
        %v1832 = vpack.c.b16 %v1797, %v1796
        %v1833 = vpack.c.b16 %v1799, %v1798
        %v1834 = vpack.c.b16 %v1801, %v1800
        %v1835 = vpack.c.b16 %v1803, %v1802
        %v1836 = vpack.c.b16 %v1805, %v1804
        %v1837 = vpack.c.b16 %v1807, %v1806
        %v1838 = vpack.c.b16 %v1809, %v1808
        %v1839 = vpack.c.b16 %v1811, %v1810
        %v1840 = vpack.c.b16 %v1813, %v1812
        %v1841 = vpack.c.b16 %v1815, %v1814
        %v1842 = vpack.c.b16 %v1817, %v1816
        %v1843 = vpack.c.b16 %v1819, %v1818
        %1868 = vmatprep.subr.bf16.mxu0 0
        %1869 = vmatpush1.bf16.msra.mxu0 %v1827
        %1870 = vmatprep.subr.bf16.mxu0 0
        %1871 = vmatpush1.bf16.msra.mxu0 %v1826
        %1872 = vmatprep.subr.bf16.mxu0 0
        %1873 = vmatpush1.bf16.msra.mxu0 %v1825
        %1874 = vmatprep.subr.bf16.mxu0 0
        %1875 = vmatpush1.bf16.msra.mxu0 %v1824
        %1876 = vmatprep.subr.bf16.mxu0 0
        %1877 = vmatpush1.bf16.msra.mxu0 %v1823
        %1878 = vmatprep.subr.bf16.mxu0 0
        %1879 = vmatpush1.bf16.msra.mxu0 %v1822
        %1880 = vmatprep.subr.bf16.mxu0 0
        %1881 = vmatpush1.bf16.msra.mxu0 %v1821
        %1882 = vmatprep.subr.bf16.mxu0 0
        %1883 = vmatpush1.bf16.msra.mxu0 %v1820
        %1884 = vmatprep.subr.bf16.mxu0 0
        %1885 = vmatpush2.bf16.msra.mxu0 %v1835
        %1886 = vmatprep.subr.bf16.mxu0 0
        %1887 = vmatpush2.bf16.msra.mxu0 %v1834
        %1888 = vmatprep.subr.bf16.mxu0 0
        %1889 = vmatpush2.bf16.msra.mxu0 %v1833
        %1890 = vmatprep.subr.bf16.mxu0 0
        %1891 = vmatpush2.bf16.msra.mxu0 %v1832
        %1892 = vmatprep.subr.bf16.mxu0 0
        %1893 = vmatpush2.bf16.msra.mxu0 %v1831
        %1894 = vmatprep.subr.bf16.mxu0 0
        %1895 = vmatpush2.bf16.msra.mxu0 %v1830
        %1896 = vmatprep.subr.bf16.mxu0 0
        %1897 = vmatpush2.bf16.msra.mxu0 %v1829
        %1898 = vmatprep.subr.bf16.mxu0 0
        %1899 = vmatpush2.bf16.msra.mxu0 %v1828
        %1900 = vmatprep.mubr.bf16.mxu0 %v1716
        %1901 = vmatmul.mubr.bf16.gmra.mxu0 %v1715
        %v1902 = vpop.f32.mrf.mxu0
        %v1903 = vadd.f32 %v1722, %v1902
        %v1904 = vpop.f32.mrf.mxu0
        %v1905 = vpop.f32.mrf.mxu0
        %v1906 = vadd.f32 %v1722, %v1905
        %v1907 = vpop.f32.mrf.mxu0
        %1908 = vdwg.mxu0
        %1909 = vmatprep.subr.bf16.mxu0 0
        %1910 = vmatpush1.bf16.msra.mxu0 %v1843
        %1911 = vmatprep.subr.bf16.mxu0 0
        %1912 = vmatpush1.bf16.msra.mxu0 %v1842
        %1913 = vmatprep.subr.bf16.mxu0 0
        %1914 = vmatpush1.bf16.msra.mxu0 %v1841
        %1915 = vmatprep.subr.bf16.mxu0 0
        %1916 = vmatpush1.bf16.msra.mxu0 %v1840
        %1917 = vmatprep.subr.bf16.mxu0 0
        %1918 = vmatpush1.bf16.msra.mxu0 %v1839
        %1919 = vmatprep.subr.bf16.mxu0 0
        %1920 = vmatpush1.bf16.msra.mxu0 %v1838
        %1921 = vmatprep.subr.bf16.mxu0 0
        %1922 = vmatpush1.bf16.msra.mxu0 %v1837
        %1923 = vmatprep.subr.bf16.mxu0 0
        %1924 = vmatpush1.bf16.msra.mxu0 %v1836
        %1925 = vmatprep.subr.bf16.mxu0 0
        %1926 = vmatpush2.bf16.msra.mxu0 0
        %1927 = vmatprep.subr.bf16.mxu0 0
        %1928 = vmatpush2.bf16.msra.mxu0 0
        %1929 = vmatprep.subr.bf16.mxu0 0
        %1930 = vmatpush2.bf16.msra.mxu0 0
        %1931 = vmatprep.subr.bf16.mxu0 0
        %1932 = vmatpush2.bf16.msra.mxu0 0
        %1933 = vmatprep.subr.bf16.mxu0 0
        %1934 = vmatpush2.bf16.msra.mxu0 0
        %1935 = vmatprep.subr.bf16.mxu0 0
        %1936 = vmatpush2.bf16.msra.mxu0 0
        %1937 = vmatprep.subr.bf16.mxu0 0
        %1938 = vmatpush2.bf16.msra.mxu0 0
        %1939 = vmatprep.subr.bf16.mxu0 0
        %1940 = vmatpush2.bf16.msra.mxu0 0
        %1941 = vmatprep.mubr.bf16.mxu0 0
        %1942 = vmatmul.mubr.bf16.gmra.mxu0 %v1717
        %v1943 = vpop.f32.mrf.mxu0
        %v1944 = vadd.f32 %v1903, %v1943
        %v1945 = vpop.f32.mrf.mxu0
        %v1946 = vpop.f32.mrf.mxu0
        %v1947 = vadd.f32 %v1906, %v1946
        %v1948 = vpop.f32.mrf.mxu0
        %1949 = vdwg.mxu0
        %v1950 = vmax.f32 %v1944, 0.0
        %v1951 = vmax.f32 %v1947, 0.0
        %1952 = vst [vmem:[#allocation4 + $0x1] sm:$0xff] %v1950
        %1953 = vst [vmem:[#allocation4 + $0x9] sm:$0xff] %v1951
        %s1954 = scalar_lea.vmem [#allocation5], 576
        %v1955 = vld [vmem:[%s1954] sm:$0xf]
        %v1956 = vld [vmem:[%s1954 + $0x4] sm:$0xf]
        %v1957 = vld [vmem:[%s1954 + $0x8] sm:$0xf]
        %v1958 = vld [vmem:[%s1954 + $0xc] sm:$0xf]
        %v1959 = vld [vmem:[%s1954 + $0x10] sm:$0xf]
        %v1960 = vld [vmem:[%s1954 + $0x14] sm:$0xf]
        %v1961 = vld [vmem:[%s1954 + $0x18] sm:$0xf]
        %v1962 = vld [vmem:[%s1954 + $0x1c] sm:$0xf]
        %v1963 = vld [vmem:[%s1954 + $0x20] sm:$0xf]
        %v1964 = vld [vmem:[%s1954 + $0x24] sm:$0xf]
        %v1965 = vld [vmem:[%s1954 + $0x28] sm:$0xf]
        %v1966 = vld [vmem:[%s1954 + $0x2c] sm:$0xf]
        %v1967 = vld [vmem:[%s1954 + $0x30] sm:$0xf]
        %v1968 = vld [vmem:[%s1954 + $0x34] sm:$0xf]
        %v1969 = vld [vmem:[%s1954 + $0x38] sm:$0xf]
        %v1970 = vld [vmem:[%s1954 + $0x3c] sm:$0xf]
        %v1971 = vld [vmem:[%s1954 + $0x40] sm:$0xf]
        %v1972 = vld [vmem:[%s1954 + $0x44] sm:$0xf]
        %v1973 = vld [vmem:[%s1954 + $0x48] sm:$0xf]
        %v1974 = vld [vmem:[%s1954 + $0x4c] sm:$0xf]
        %v1975 = vld [vmem:[%s1954 + $0x50] sm:$0xf]
        %v1976 = vld [vmem:[%s1954 + $0x54] sm:$0xf]
        %v1977 = vld [vmem:[%s1954 + $0x58] sm:$0xf]
        %v1978 = vld [vmem:[%s1954 + $0x5c] sm:$0xf]
        %v1979 = vld [vmem:[%s1954 + $0x60] sm:$0xf]
        %v1980 = vld [vmem:[%s1954 + $0x64] sm:$0xf]
        %v1981 = vld [vmem:[%s1954 + $0x68] sm:$0xf]
        %v1982 = vld [vmem:[%s1954 + $0x6c] sm:$0xf]
        %v1983 = vld [vmem:[%s1954 + $0x70] sm:$0xf]
        %v1984 = vld [vmem:[%s1954 + $0x74] sm:$0xf]
        %v1985 = vld [vmem:[%s1954 + $0x78] sm:$0xf]
        %v1986 = vld [vmem:[%s1954 + $0x7c] sm:$0xf]
        %v1987 = vld [vmem:[%s1954 + $0x80] sm:$0xf]
        %v1988 = vld [vmem:[%s1954 + $0x84] sm:$0xf]
        %v1989 = vld [vmem:[%s1954 + $0x88] sm:$0xf]
        %v1990 = vld [vmem:[%s1954 + $0x8c] sm:$0xf]
        %v1991 = vld [vmem:[%s1954 + $0x90] sm:$0xf]
        %v1992 = vld [vmem:[%s1954 + $0x94] sm:$0xf]
        %v1993 = vld [vmem:[%s1954 + $0x98] sm:$0xf]
        %v1994 = vld [vmem:[%s1954 + $0x9c] sm:$0xf]
        %v1995 = vld [vmem:[%s1954 + $0xa0] sm:$0xf]
        %v1996 = vld [vmem:[%s1954 + $0xa4] sm:$0xf]
        %v1997 = vld [vmem:[%s1954 + $0xa8] sm:$0xf]
        %v1998 = vld [vmem:[%s1954 + $0xac] sm:$0xf]
        %v1999 = vld [vmem:[%s1954 + $0xb0] sm:$0xf]
        %v2000 = vld [vmem:[%s1954 + $0xb4] sm:$0xf]
        %v2001 = vld [vmem:[%s1954 + $0xb8] sm:$0xf]
        %v2002 = vld [vmem:[%s1954 + $0xbc] sm:$0xf]
        %s2003 = scalar_lea.vmem %s8, 3
        %v2004 = vld [vmem:[%s2003] sm:$0x1]
        %v2005 = vld [vmem:[#allocation4] sm:$0xff]
        %v2006 = vld [vmem:[#allocation4 + $0x8] sm:$0xff]
        %v2007 = vld [vmem:[#allocation4 + $0x1] sm:$0xff]
        %v2008 = vld [vmem:[#allocation4 + $0x9] sm:$0xff]
        %v2009 = vld [vmem:[#allocation4 + $0x2] sm:$0xff]
        %v2010 = vld [vmem:[#allocation4 + $0xa] sm:$0xff]
        %v2011 = vpack.c.bf16 %v2006, %v2005
        %v2012 = vpack.c.bf16 %v2008, %v2007
        %v2013 = vpack.c.bf16 %v2010, %v2009
        %v2015 = vlaneseq
        %v2016 = vshrl.u32 %v2015, 7
        %v2017 = vsub.s32 0, %v2016
        %v2018 = vrot.slane %v2004, %v2017
        %v2068 = vunpack.c.l.b16 %v1955
        %v2069 = vunpack.c.l.b16 %v1956
        %v2070 = vunpack.c.l.b16 %v1957
        %v2071 = vunpack.c.l.b16 %v1958
        %v2072 = vunpack.c.l.b16 %v1959
        %v2073 = vunpack.c.l.b16 %v1960
        %v2074 = vunpack.c.l.b16 %v1961
        %v2075 = vunpack.c.l.b16 %v1962
        %v2076 = vunpack.c.l.b16 %v1963
        %v2077 = vunpack.c.l.b16 %v1964
        %v2078 = vunpack.c.l.b16 %v1965
        %v2079 = vunpack.c.l.b16 %v1966
        %v2080 = vunpack.c.l.b16 %v1967
        %v2081 = vunpack.c.l.b16 %v1968
        %v2082 = vunpack.c.l.b16 %v1969
        %v2083 = vunpack.c.l.b16 %v1970
        %v2084 = vunpack.c.l.b16 %v1971
        %v2085 = vunpack.c.l.b16 %v1972
        %v2086 = vunpack.c.l.b16 %v1973
        %v2087 = vunpack.c.l.b16 %v1974
        %v2088 = vunpack.c.l.b16 %v1975
        %v2089 = vunpack.c.l.b16 %v1976
        %v2090 = vunpack.c.l.b16 %v1977
        %v2091 = vunpack.c.l.b16 %v1978
        %v2092 = vunpack.c.l.b16 %v1979
        %v2093 = vunpack.c.l.b16 %v1980
        %v2094 = vunpack.c.l.b16 %v1981
        %v2095 = vunpack.c.l.b16 %v1982
        %v2096 = vunpack.c.l.b16 %v1983
        %v2097 = vunpack.c.l.b16 %v1984
        %v2098 = vunpack.c.l.b16 %v1985
        %v2099 = vunpack.c.l.b16 %v1986
        %v2100 = vunpack.c.l.b16 %v1987
        %v2101 = vunpack.c.l.b16 %v1988
        %v2102 = vunpack.c.l.b16 %v1989
        %v2103 = vunpack.c.l.b16 %v1990
        %v2104 = vunpack.c.l.b16 %v1991
        %v2105 = vunpack.c.l.b16 %v1992
        %v2106 = vunpack.c.l.b16 %v1993
        %v2107 = vunpack.c.l.b16 %v1994
        %v2108 = vunpack.c.l.b16 %v1995
        %v2109 = vunpack.c.l.b16 %v1996
        %v2110 = vunpack.c.l.b16 %v1997
        %v2111 = vunpack.c.l.b16 %v1998
        %v2112 = vunpack.c.l.b16 %v1999
        %v2113 = vunpack.c.l.b16 %v2000
        %v2114 = vunpack.c.l.b16 %v2001
        %v2115 = vunpack.c.l.b16 %v2002
        %v2116 = vpack.c.b16 %v2069, %v2068
        %v2117 = vpack.c.b16 %v2071, %v2070
        %v2118 = vpack.c.b16 %v2073, %v2072
        %v2119 = vpack.c.b16 %v2075, %v2074
        %v2120 = vpack.c.b16 %v2077, %v2076
        %v2121 = vpack.c.b16 %v2079, %v2078
        %v2122 = vpack.c.b16 %v2081, %v2080
        %v2123 = vpack.c.b16 %v2083, %v2082
        %v2124 = vpack.c.b16 %v2085, %v2084
        %v2125 = vpack.c.b16 %v2087, %v2086
        %v2126 = vpack.c.b16 %v2089, %v2088
        %v2127 = vpack.c.b16 %v2091, %v2090
        %v2128 = vpack.c.b16 %v2093, %v2092
        %v2129 = vpack.c.b16 %v2095, %v2094
        %v2130 = vpack.c.b16 %v2097, %v2096
        %v2131 = vpack.c.b16 %v2099, %v2098
        %v2132 = vpack.c.b16 %v2101, %v2100
        %v2133 = vpack.c.b16 %v2103, %v2102
        %v2134 = vpack.c.b16 %v2105, %v2104
        %v2135 = vpack.c.b16 %v2107, %v2106
        %v2136 = vpack.c.b16 %v2109, %v2108
        %v2137 = vpack.c.b16 %v2111, %v2110
        %v2138 = vpack.c.b16 %v2113, %v2112
        %v2139 = vpack.c.b16 %v2115, %v2114
        %2164 = vmatprep.subr.bf16.mxu0 0
        %2165 = vmatpush1.bf16.msra.mxu0 %v2123
        %2166 = vmatprep.subr.bf16.mxu0 0
        %2167 = vmatpush1.bf16.msra.mxu0 %v2122
        %2168 = vmatprep.subr.bf16.mxu0 0
        %2169 = vmatpush1.bf16.msra.mxu0 %v2121
        %2170 = vmatprep.subr.bf16.mxu0 0
        %2171 = vmatpush1.bf16.msra.mxu0 %v2120
        %2172 = vmatprep.subr.bf16.mxu0 0
        %2173 = vmatpush1.bf16.msra.mxu0 %v2119
        %2174 = vmatprep.subr.bf16.mxu0 0
        %2175 = vmatpush1.bf16.msra.mxu0 %v2118
        %2176 = vmatprep.subr.bf16.mxu0 0
        %2177 = vmatpush1.bf16.msra.mxu0 %v2117
        %2178 = vmatprep.subr.bf16.mxu0 0
        %2179 = vmatpush1.bf16.msra.mxu0 %v2116
        %2180 = vmatprep.subr.bf16.mxu0 0
        %2181 = vmatpush2.bf16.msra.mxu0 %v2131
        %2182 = vmatprep.subr.bf16.mxu0 0
        %2183 = vmatpush2.bf16.msra.mxu0 %v2130
        %2184 = vmatprep.subr.bf16.mxu0 0
        %2185 = vmatpush2.bf16.msra.mxu0 %v2129
        %2186 = vmatprep.subr.bf16.mxu0 0
        %2187 = vmatpush2.bf16.msra.mxu0 %v2128
        %2188 = vmatprep.subr.bf16.mxu0 0
        %2189 = vmatpush2.bf16.msra.mxu0 %v2127
        %2190 = vmatprep.subr.bf16.mxu0 0
        %2191 = vmatpush2.bf16.msra.mxu0 %v2126
        %2192 = vmatprep.subr.bf16.mxu0 0
        %2193 = vmatpush2.bf16.msra.mxu0 %v2125
        %2194 = vmatprep.subr.bf16.mxu0 0
        %2195 = vmatpush2.bf16.msra.mxu0 %v2124
        %2196 = vmatprep.mubr.bf16.mxu0 %v2012
        %2197 = vmatmul.mubr.bf16.gmra.mxu0 %v2011
        %v2198 = vpop.f32.mrf.mxu0
        %v2199 = vadd.f32 %v2018, %v2198
        %v2200 = vpop.f32.mrf.mxu0
        %v2201 = vpop.f32.mrf.mxu0
        %v2202 = vadd.f32 %v2018, %v2201
        %v2203 = vpop.f32.mrf.mxu0
        %2204 = vdwg.mxu0
        %2205 = vmatprep.subr.bf16.mxu0 0
        %2206 = vmatpush1.bf16.msra.mxu0 %v2139
        %2207 = vmatprep.subr.bf16.mxu0 0
        %2208 = vmatpush1.bf16.msra.mxu0 %v2138
        %2209 = vmatprep.subr.bf16.mxu0 0
        %2210 = vmatpush1.bf16.msra.mxu0 %v2137
        %2211 = vmatprep.subr.bf16.mxu0 0
        %2212 = vmatpush1.bf16.msra.mxu0 %v2136
        %2213 = vmatprep.subr.bf16.mxu0 0
        %2214 = vmatpush1.bf16.msra.mxu0 %v2135
        %2215 = vmatprep.subr.bf16.mxu0 0
        %2216 = vmatpush1.bf16.msra.mxu0 %v2134
        %2217 = vmatprep.subr.bf16.mxu0 0
        %2218 = vmatpush1.bf16.msra.mxu0 %v2133
        %2219 = vmatprep.subr.bf16.mxu0 0
        %2220 = vmatpush1.bf16.msra.mxu0 %v2132
        %2221 = vmatprep.subr.bf16.mxu0 0
        %2222 = vmatpush2.bf16.msra.mxu0 0
        %2223 = vmatprep.subr.bf16.mxu0 0
        %2224 = vmatpush2.bf16.msra.mxu0 0
        %2225 = vmatprep.subr.bf16.mxu0 0
        %2226 = vmatpush2.bf16.msra.mxu0 0
        %2227 = vmatprep.subr.bf16.mxu0 0
        %2228 = vmatpush2.bf16.msra.mxu0 0
        %2229 = vmatprep.subr.bf16.mxu0 0
        %2230 = vmatpush2.bf16.msra.mxu0 0
        %2231 = vmatprep.subr.bf16.mxu0 0
        %2232 = vmatpush2.bf16.msra.mxu0 0
        %2233 = vmatprep.subr.bf16.mxu0 0
        %2234 = vmatpush2.bf16.msra.mxu0 0
        %2235 = vmatprep.subr.bf16.mxu0 0
        %2236 = vmatpush2.bf16.msra.mxu0 0
        %2237 = vmatprep.mubr.bf16.mxu0 0
        %2238 = vmatmul.mubr.bf16.gmra.mxu0 %v2013
        %v2239 = vpop.f32.mrf.mxu0
        %v2240 = vadd.f32 %v2199, %v2239
        %v2241 = vpop.f32.mrf.mxu0
        %v2242 = vpop.f32.mrf.mxu0
        %v2243 = vadd.f32 %v2202, %v2242
        %v2244 = vpop.f32.mrf.mxu0
        %2245 = vdwg.mxu0
        %v2246 = vld [vmem:[#allocation3 + $0x1] sm:$0xff]
        %v2247 = vld [vmem:[#allocation3 + $0x9] sm:$0xff]
        %v2248 = vadd.f32 %v2240, %v2246
        %v2249 = vadd.f32 %v2243, %v2247
        %v2250 = vmax.f32 %v2248, 0.0
        %v2251 = vmax.f32 %v2249, 0.0
        %2252 = vst [vmem:[#allocation3 + $0x1] sm:$0xff] %v2250
        %2253 = vst [vmem:[#allocation3 + $0x9] sm:$0xff] %v2251
        %s2254 = scalar_lea.vmem [#allocation5], 768
        %v2255 = vld [vmem:[%s2254] sm:$0xf]
        %v2256 = vld [vmem:[%s2254 + $0x4] sm:$0xf]
        %v2257 = vld [vmem:[%s2254 + $0x8] sm:$0xf]
        %v2258 = vld [vmem:[%s2254 + $0xc] sm:$0xf]
        %v2259 = vld [vmem:[%s2254 + $0x10] sm:$0xf]
        %v2260 = vld [vmem:[%s2254 + $0x14] sm:$0xf]
        %v2261 = vld [vmem:[%s2254 + $0x18] sm:$0xf]
        %v2262 = vld [vmem:[%s2254 + $0x1c] sm:$0xf]
        %v2263 = vld [vmem:[%s2254 + $0x20] sm:$0xf]
        %v2264 = vld [vmem:[%s2254 + $0x24] sm:$0xf]
        %v2265 = vld [vmem:[%s2254 + $0x28] sm:$0xf]
        %v2266 = vld [vmem:[%s2254 + $0x2c] sm:$0xf]
        %v2267 = vld [vmem:[%s2254 + $0x30] sm:$0xf]
        %v2268 = vld [vmem:[%s2254 + $0x34] sm:$0xf]
        %v2269 = vld [vmem:[%s2254 + $0x38] sm:$0xf]
        %v2270 = vld [vmem:[%s2254 + $0x3c] sm:$0xf]
        %v2271 = vld [vmem:[%s2254 + $0x40] sm:$0xf]
        %v2272 = vld [vmem:[%s2254 + $0x44] sm:$0xf]
        %v2273 = vld [vmem:[%s2254 + $0x48] sm:$0xf]
        %v2274 = vld [vmem:[%s2254 + $0x4c] sm:$0xf]
        %v2275 = vld [vmem:[%s2254 + $0x50] sm:$0xf]
        %v2276 = vld [vmem:[%s2254 + $0x54] sm:$0xf]
        %v2277 = vld [vmem:[%s2254 + $0x58] sm:$0xf]
        %v2278 = vld [vmem:[%s2254 + $0x5c] sm:$0xf]
        %v2279 = vld [vmem:[%s2254 + $0x60] sm:$0xf]
        %v2280 = vld [vmem:[%s2254 + $0x64] sm:$0xf]
        %v2281 = vld [vmem:[%s2254 + $0x68] sm:$0xf]
        %v2282 = vld [vmem:[%s2254 + $0x6c] sm:$0xf]
        %v2283 = vld [vmem:[%s2254 + $0x70] sm:$0xf]
        %v2284 = vld [vmem:[%s2254 + $0x74] sm:$0xf]
        %v2285 = vld [vmem:[%s2254 + $0x78] sm:$0xf]
        %v2286 = vld [vmem:[%s2254 + $0x7c] sm:$0xf]
        %v2287 = vld [vmem:[%s2254 + $0x80] sm:$0xf]
        %v2288 = vld [vmem:[%s2254 + $0x84] sm:$0xf]
        %v2289 = vld [vmem:[%s2254 + $0x88] sm:$0xf]
        %v2290 = vld [vmem:[%s2254 + $0x8c] sm:$0xf]
        %v2291 = vld [vmem:[%s2254 + $0x90] sm:$0xf]
        %v2292 = vld [vmem:[%s2254 + $0x94] sm:$0xf]
        %v2293 = vld [vmem:[%s2254 + $0x98] sm:$0xf]
        %v2294 = vld [vmem:[%s2254 + $0x9c] sm:$0xf]
        %v2295 = vld [vmem:[%s2254 + $0xa0] sm:$0xf]
        %v2296 = vld [vmem:[%s2254 + $0xa4] sm:$0xf]
        %v2297 = vld [vmem:[%s2254 + $0xa8] sm:$0xf]
        %v2298 = vld [vmem:[%s2254 + $0xac] sm:$0xf]
        %v2299 = vld [vmem:[%s2254 + $0xb0] sm:$0xf]
        %v2300 = vld [vmem:[%s2254 + $0xb4] sm:$0xf]
        %v2301 = vld [vmem:[%s2254 + $0xb8] sm:$0xf]
        %v2302 = vld [vmem:[%s2254 + $0xbc] sm:$0xf]
        %s2303 = scalar_lea.vmem %s8, 4
        %v2304 = vld [vmem:[%s2303] sm:$0x1]
        %v2305 = vld [vmem:[#allocation3] sm:$0xff]
        %v2306 = vld [vmem:[#allocation3 + $0x8] sm:$0xff]
        %v2307 = vld [vmem:[#allocation3 + $0x1] sm:$0xff]
        %v2308 = vld [vmem:[#allocation3 + $0x9] sm:$0xff]
        %v2309 = vld [vmem:[#allocation3 + $0x2] sm:$0xff]
        %v2310 = vld [vmem:[#allocation3 + $0xa] sm:$0xff]
        %v2311 = vpack.c.bf16 %v2306, %v2305
        %v2312 = vpack.c.bf16 %v2308, %v2307
        %v2313 = vpack.c.bf16 %v2310, %v2309
        %v2315 = vlaneseq
        %v2316 = vshrl.u32 %v2315, 7
        %v2317 = vsub.s32 0, %v2316
        %v2318 = vrot.slane %v2304, %v2317
        %v2368 = vunpack.c.l.b16 %v2255
        %v2369 = vunpack.c.l.b16 %v2256
        %v2370 = vunpack.c.l.b16 %v2257
        %v2371 = vunpack.c.l.b16 %v2258
        %v2372 = vunpack.c.l.b16 %v2259
        %v2373 = vunpack.c.l.b16 %v2260
        %v2374 = vunpack.c.l.b16 %v2261
        %v2375 = vunpack.c.l.b16 %v2262
        %v2376 = vunpack.c.l.b16 %v2263
        %v2377 = vunpack.c.l.b16 %v2264
        %v2378 = vunpack.c.l.b16 %v2265
        %v2379 = vunpack.c.l.b16 %v2266
        %v2380 = vunpack.c.l.b16 %v2267
        %v2381 = vunpack.c.l.b16 %v2268
        %v2382 = vunpack.c.l.b16 %v2269
        %v2383 = vunpack.c.l.b16 %v2270
        %v2384 = vunpack.c.l.b16 %v2271
        %v2385 = vunpack.c.l.b16 %v2272
        %v2386 = vunpack.c.l.b16 %v2273
        %v2387 = vunpack.c.l.b16 %v2274
        %v2388 = vunpack.c.l.b16 %v2275
        %v2389 = vunpack.c.l.b16 %v2276
        %v2390 = vunpack.c.l.b16 %v2277
        %v2391 = vunpack.c.l.b16 %v2278
        %v2392 = vunpack.c.l.b16 %v2279
        %v2393 = vunpack.c.l.b16 %v2280
        %v2394 = vunpack.c.l.b16 %v2281
        %v2395 = vunpack.c.l.b16 %v2282
        %v2396 = vunpack.c.l.b16 %v2283
        %v2397 = vunpack.c.l.b16 %v2284
        %v2398 = vunpack.c.l.b16 %v2285
        %v2399 = vunpack.c.l.b16 %v2286
        %v2400 = vunpack.c.l.b16 %v2287
        %v2401 = vunpack.c.l.b16 %v2288
        %v2402 = vunpack.c.l.b16 %v2289
        %v2403 = vunpack.c.l.b16 %v2290
        %v2404 = vunpack.c.l.b16 %v2291
        %v2405 = vunpack.c.l.b16 %v2292
        %v2406 = vunpack.c.l.b16 %v2293
        %v2407 = vunpack.c.l.b16 %v2294
        %v2408 = vunpack.c.l.b16 %v2295
        %v2409 = vunpack.c.l.b16 %v2296
        %v2410 = vunpack.c.l.b16 %v2297
        %v2411 = vunpack.c.l.b16 %v2298
        %v2412 = vunpack.c.l.b16 %v2299
        %v2413 = vunpack.c.l.b16 %v2300
        %v2414 = vunpack.c.l.b16 %v2301
        %v2415 = vunpack.c.l.b16 %v2302
        %v2416 = vpack.c.b16 %v2369, %v2368
        %v2417 = vpack.c.b16 %v2371, %v2370
        %v2418 = vpack.c.b16 %v2373, %v2372
        %v2419 = vpack.c.b16 %v2375, %v2374
        %v2420 = vpack.c.b16 %v2377, %v2376
        %v2421 = vpack.c.b16 %v2379, %v2378
        %v2422 = vpack.c.b16 %v2381, %v2380
        %v2423 = vpack.c.b16 %v2383, %v2382
        %v2424 = vpack.c.b16 %v2385, %v2384
        %v2425 = vpack.c.b16 %v2387, %v2386
        %v2426 = vpack.c.b16 %v2389, %v2388
        %v2427 = vpack.c.b16 %v2391, %v2390
        %v2428 = vpack.c.b16 %v2393, %v2392
        %v2429 = vpack.c.b16 %v2395, %v2394
        %v2430 = vpack.c.b16 %v2397, %v2396
        %v2431 = vpack.c.b16 %v2399, %v2398
        %v2432 = vpack.c.b16 %v2401, %v2400
        %v2433 = vpack.c.b16 %v2403, %v2402
        %v2434 = vpack.c.b16 %v2405, %v2404
        %v2435 = vpack.c.b16 %v2407, %v2406
        %v2436 = vpack.c.b16 %v2409, %v2408
        %v2437 = vpack.c.b16 %v2411, %v2410
        %v2438 = vpack.c.b16 %v2413, %v2412
        %v2439 = vpack.c.b16 %v2415, %v2414
        %2464 = vmatprep.subr.bf16.mxu0 0
        %2465 = vmatpush1.bf16.msra.mxu0 %v2423
        %2466 = vmatprep.subr.bf16.mxu0 0
        %2467 = vmatpush1.bf16.msra.mxu0 %v2422
        %2468 = vmatprep.subr.bf16.mxu0 0
        %2469 = vmatpush1.bf16.msra.mxu0 %v2421
        %2470 = vmatprep.subr.bf16.mxu0 0
        %2471 = vmatpush1.bf16.msra.mxu0 %v2420
        %2472 = vmatprep.subr.bf16.mxu0 0
        %2473 = vmatpush1.bf16.msra.mxu0 %v2419
        %2474 = vmatprep.subr.bf16.mxu0 0
        %2475 = vmatpush1.bf16.msra.mxu0 %v2418
        %2476 = vmatprep.subr.bf16.mxu0 0
        %2477 = vmatpush1.bf16.msra.mxu0 %v2417
        %2478 = vmatprep.subr.bf16.mxu0 0
        %2479 = vmatpush1.bf16.msra.mxu0 %v2416
        %2480 = vmatprep.subr.bf16.mxu0 0
        %2481 = vmatpush2.bf16.msra.mxu0 %v2431
        %2482 = vmatprep.subr.bf16.mxu0 0
        %2483 = vmatpush2.bf16.msra.mxu0 %v2430
        %2484 = vmatprep.subr.bf16.mxu0 0
        %2485 = vmatpush2.bf16.msra.mxu0 %v2429
        %2486 = vmatprep.subr.bf16.mxu0 0
        %2487 = vmatpush2.bf16.msra.mxu0 %v2428
        %2488 = vmatprep.subr.bf16.mxu0 0
        %2489 = vmatpush2.bf16.msra.mxu0 %v2427
        %2490 = vmatprep.subr.bf16.mxu0 0
        %2491 = vmatpush2.bf16.msra.mxu0 %v2426
        %2492 = vmatprep.subr.bf16.mxu0 0
        %2493 = vmatpush2.bf16.msra.mxu0 %v2425
        %2494 = vmatprep.subr.bf16.mxu0 0
        %2495 = vmatpush2.bf16.msra.mxu0 %v2424
        %2496 = vmatprep.mubr.bf16.mxu0 %v2312
        %2497 = vmatmul.mubr.bf16.gmra.mxu0 %v2311
        %v2498 = vpop.f32.mrf.mxu0
        %v2499 = vadd.f32 %v2318, %v2498
        %v2500 = vpop.f32.mrf.mxu0
        %v2501 = vpop.f32.mrf.mxu0
        %v2502 = vadd.f32 %v2318, %v2501
        %v2503 = vpop.f32.mrf.mxu0
        %2504 = vdwg.mxu0
        %2505 = vmatprep.subr.bf16.mxu0 0
        %2506 = vmatpush1.bf16.msra.mxu0 %v2439
        %2507 = vmatprep.subr.bf16.mxu0 0
        %2508 = vmatpush1.bf16.msra.mxu0 %v2438
        %2509 = vmatprep.subr.bf16.mxu0 0
        %2510 = vmatpush1.bf16.msra.mxu0 %v2437
        %2511 = vmatprep.subr.bf16.mxu0 0
        %2512 = vmatpush1.bf16.msra.mxu0 %v2436
        %2513 = vmatprep.subr.bf16.mxu0 0
        %2514 = vmatpush1.bf16.msra.mxu0 %v2435
        %2515 = vmatprep.subr.bf16.mxu0 0
        %2516 = vmatpush1.bf16.msra.mxu0 %v2434
        %2517 = vmatprep.subr.bf16.mxu0 0
        %2518 = vmatpush1.bf16.msra.mxu0 %v2433
        %2519 = vmatprep.subr.bf16.mxu0 0
        %2520 = vmatpush1.bf16.msra.mxu0 %v2432
        %2521 = vmatprep.subr.bf16.mxu0 0
        %2522 = vmatpush2.bf16.msra.mxu0 0
        %2523 = vmatprep.subr.bf16.mxu0 0
        %2524 = vmatpush2.bf16.msra.mxu0 0
        %2525 = vmatprep.subr.bf16.mxu0 0
        %2526 = vmatpush2.bf16.msra.mxu0 0
        %2527 = vmatprep.subr.bf16.mxu0 0
        %2528 = vmatpush2.bf16.msra.mxu0 0
        %2529 = vmatprep.subr.bf16.mxu0 0
        %2530 = vmatpush2.bf16.msra.mxu0 0
        %2531 = vmatprep.subr.bf16.mxu0 0
        %2532 = vmatpush2.bf16.msra.mxu0 0
        %2533 = vmatprep.subr.bf16.mxu0 0
        %2534 = vmatpush2.bf16.msra.mxu0 0
        %2535 = vmatprep.subr.bf16.mxu0 0
        %2536 = vmatpush2.bf16.msra.mxu0 0
        %2537 = vmatprep.mubr.bf16.mxu0 0
        %2538 = vmatmul.mubr.bf16.gmra.mxu0 %v2313
        %v2539 = vpop.f32.mrf.mxu0
        %v2540 = vadd.f32 %v2499, %v2539
        %v2541 = vpop.f32.mrf.mxu0
        %v2542 = vpop.f32.mrf.mxu0
        %v2543 = vadd.f32 %v2502, %v2542
        %v2544 = vpop.f32.mrf.mxu0
        %2545 = vdwg.mxu0
        %v2546 = vmax.f32 %v2540, 0.0
        %v2547 = vmax.f32 %v2543, 0.0
        %2548 = vst [vmem:[#allocation4 + $0x1] sm:$0xff] %v2546
        %2549 = vst [vmem:[#allocation4 + $0x9] sm:$0xff] %v2547
        %s2550 = scalar_lea.vmem [#allocation5], 960
        %v2551 = vld [vmem:[%s2550] sm:$0xf]
        %v2552 = vld [vmem:[%s2550 + $0x4] sm:$0xf]
        %v2553 = vld [vmem:[%s2550 + $0x8] sm:$0xf]
        %v2554 = vld [vmem:[%s2550 + $0xc] sm:$0xf]
        %v2555 = vld [vmem:[%s2550 + $0x10] sm:$0xf]
        %v2556 = vld [vmem:[%s2550 + $0x14] sm:$0xf]
        %v2557 = vld [vmem:[%s2550 + $0x18] sm:$0xf]
        %v2558 = vld [vmem:[%s2550 + $0x1c] sm:$0xf]
        %v2559 = vld [vmem:[%s2550 + $0x20] sm:$0xf]
        %v2560 = vld [vmem:[%s2550 + $0x24] sm:$0xf]
        %v2561 = vld [vmem:[%s2550 + $0x28] sm:$0xf]
        %v2562 = vld [vmem:[%s2550 + $0x2c] sm:$0xf]
        %v2563 = vld [vmem:[%s2550 + $0x30] sm:$0xf]
        %v2564 = vld [vmem:[%s2550 + $0x34] sm:$0xf]
        %v2565 = vld [vmem:[%s2550 + $0x38] sm:$0xf]
        %v2566 = vld [vmem:[%s2550 + $0x3c] sm:$0xf]
        %v2567 = vld [vmem:[%s2550 + $0x40] sm:$0xf]
        %v2568 = vld [vmem:[%s2550 + $0x44] sm:$0xf]
        %v2569 = vld [vmem:[%s2550 + $0x48] sm:$0xf]
        %v2570 = vld [vmem:[%s2550 + $0x4c] sm:$0xf]
        %v2571 = vld [vmem:[%s2550 + $0x50] sm:$0xf]
        %v2572 = vld [vmem:[%s2550 + $0x54] sm:$0xf]
        %v2573 = vld [vmem:[%s2550 + $0x58] sm:$0xf]
        %v2574 = vld [vmem:[%s2550 + $0x5c] sm:$0xf]
        %v2575 = vld [vmem:[%s2550 + $0x60] sm:$0xf]
        %v2576 = vld [vmem:[%s2550 + $0x64] sm:$0xf]
        %v2577 = vld [vmem:[%s2550 + $0x68] sm:$0xf]
        %v2578 = vld [vmem:[%s2550 + $0x6c] sm:$0xf]
        %v2579 = vld [vmem:[%s2550 + $0x70] sm:$0xf]
        %v2580 = vld [vmem:[%s2550 + $0x74] sm:$0xf]
        %v2581 = vld [vmem:[%s2550 + $0x78] sm:$0xf]
        %v2582 = vld [vmem:[%s2550 + $0x7c] sm:$0xf]
        %v2583 = vld [vmem:[%s2550 + $0x80] sm:$0xf]
        %v2584 = vld [vmem:[%s2550 + $0x84] sm:$0xf]
        %v2585 = vld [vmem:[%s2550 + $0x88] sm:$0xf]
        %v2586 = vld [vmem:[%s2550 + $0x8c] sm:$0xf]
        %v2587 = vld [vmem:[%s2550 + $0x90] sm:$0xf]
        %v2588 = vld [vmem:[%s2550 + $0x94] sm:$0xf]
        %v2589 = vld [vmem:[%s2550 + $0x98] sm:$0xf]
        %v2590 = vld [vmem:[%s2550 + $0x9c] sm:$0xf]
        %v2591 = vld [vmem:[%s2550 + $0xa0] sm:$0xf]
        %v2592 = vld [vmem:[%s2550 + $0xa4] sm:$0xf]
        %v2593 = vld [vmem:[%s2550 + $0xa8] sm:$0xf]
        %v2594 = vld [vmem:[%s2550 + $0xac] sm:$0xf]
        %v2595 = vld [vmem:[%s2550 + $0xb0] sm:$0xf]
        %v2596 = vld [vmem:[%s2550 + $0xb4] sm:$0xf]
        %v2597 = vld [vmem:[%s2550 + $0xb8] sm:$0xf]
        %v2598 = vld [vmem:[%s2550 + $0xbc] sm:$0xf]
        %s2599 = scalar_lea.vmem %s8, 5
        %v2600 = vld [vmem:[%s2599] sm:$0x1]
        %v2601 = vld [vmem:[#allocation4] sm:$0xff]
        %v2602 = vld [vmem:[#allocation4 + $0x8] sm:$0xff]
        %v2603 = vld [vmem:[#allocation4 + $0x1] sm:$0xff]
        %v2604 = vld [vmem:[#allocation4 + $0x9] sm:$0xff]
        %v2605 = vld [vmem:[#allocation4 + $0x2] sm:$0xff]
        %v2606 = vld [vmem:[#allocation4 + $0xa] sm:$0xff]
        %v2607 = vpack.c.bf16 %v2602, %v2601
        %v2608 = vpack.c.bf16 %v2604, %v2603
        %v2609 = vpack.c.bf16 %v2606, %v2605
        %v2611 = vlaneseq
        %v2612 = vshrl.u32 %v2611, 7
        %v2613 = vsub.s32 0, %v2612
        %v2614 = vrot.slane %v2600, %v2613
        %v2664 = vunpack.c.l.b16 %v2551
        %v2665 = vunpack.c.l.b16 %v2552
        %v2666 = vunpack.c.l.b16 %v2553
        %v2667 = vunpack.c.l.b16 %v2554
        %v2668 = vunpack.c.l.b16 %v2555
        %v2669 = vunpack.c.l.b16 %v2556
        %v2670 = vunpack.c.l.b16 %v2557
        %v2671 = vunpack.c.l.b16 %v2558
        %v2672 = vunpack.c.l.b16 %v2559
        %v2673 = vunpack.c.l.b16 %v2560
        %v2674 = vunpack.c.l.b16 %v2561
        %v2675 = vunpack.c.l.b16 %v2562
        %v2676 = vunpack.c.l.b16 %v2563
        %v2677 = vunpack.c.l.b16 %v2564
        %v2678 = vunpack.c.l.b16 %v2565
        %v2679 = vunpack.c.l.b16 %v2566
        %v2680 = vunpack.c.l.b16 %v2567
        %v2681 = vunpack.c.l.b16 %v2568
        %v2682 = vunpack.c.l.b16 %v2569
        %v2683 = vunpack.c.l.b16 %v2570
        %v2684 = vunpack.c.l.b16 %v2571
        %v2685 = vunpack.c.l.b16 %v2572
        %v2686 = vunpack.c.l.b16 %v2573
        %v2687 = vunpack.c.l.b16 %v2574
        %v2688 = vunpack.c.l.b16 %v2575
        %v2689 = vunpack.c.l.b16 %v2576
        %v2690 = vunpack.c.l.b16 %v2577
        %v2691 = vunpack.c.l.b16 %v2578
        %v2692 = vunpack.c.l.b16 %v2579
        %v2693 = vunpack.c.l.b16 %v2580
        %v2694 = vunpack.c.l.b16 %v2581
        %v2695 = vunpack.c.l.b16 %v2582
        %v2696 = vunpack.c.l.b16 %v2583
        %v2697 = vunpack.c.l.b16 %v2584
        %v2698 = vunpack.c.l.b16 %v2585
        %v2699 = vunpack.c.l.b16 %v2586
        %v2700 = vunpack.c.l.b16 %v2587
        %v2701 = vunpack.c.l.b16 %v2588
        %v2702 = vunpack.c.l.b16 %v2589
        %v2703 = vunpack.c.l.b16 %v2590
        %v2704 = vunpack.c.l.b16 %v2591
        %v2705 = vunpack.c.l.b16 %v2592
        %v2706 = vunpack.c.l.b16 %v2593
        %v2707 = vunpack.c.l.b16 %v2594
        %v2708 = vunpack.c.l.b16 %v2595
        %v2709 = vunpack.c.l.b16 %v2596
        %v2710 = vunpack.c.l.b16 %v2597
        %v2711 = vunpack.c.l.b16 %v2598
        %v2712 = vpack.c.b16 %v2665, %v2664
        %v2713 = vpack.c.b16 %v2667, %v2666
        %v2714 = vpack.c.b16 %v2669, %v2668
        %v2715 = vpack.c.b16 %v2671, %v2670
        %v2716 = vpack.c.b16 %v2673, %v2672
        %v2717 = vpack.c.b16 %v2675, %v2674
        %v2718 = vpack.c.b16 %v2677, %v2676
        %v2719 = vpack.c.b16 %v2679, %v2678
        %v2720 = vpack.c.b16 %v2681, %v2680
        %v2721 = vpack.c.b16 %v2683, %v2682
        %v2722 = vpack.c.b16 %v2685, %v2684
        %v2723 = vpack.c.b16 %v2687, %v2686
        %v2724 = vpack.c.b16 %v2689, %v2688
        %v2725 = vpack.c.b16 %v2691, %v2690
        %v2726 = vpack.c.b16 %v2693, %v2692
        %v2727 = vpack.c.b16 %v2695, %v2694
        %v2728 = vpack.c.b16 %v2697, %v2696
        %v2729 = vpack.c.b16 %v2699, %v2698
        %v2730 = vpack.c.b16 %v2701, %v2700
        %v2731 = vpack.c.b16 %v2703, %v2702
        %v2732 = vpack.c.b16 %v2705, %v2704
        %v2733 = vpack.c.b16 %v2707, %v2706
        %v2734 = vpack.c.b16 %v2709, %v2708
        %v2735 = vpack.c.b16 %v2711, %v2710
        %2760 = vmatprep.subr.bf16.mxu0 0
        %2761 = vmatpush1.bf16.msra.mxu0 %v2719
        %2762 = vmatprep.subr.bf16.mxu0 0
        %2763 = vmatpush1.bf16.msra.mxu0 %v2718
        %2764 = vmatprep.subr.bf16.mxu0 0
        %2765 = vmatpush1.bf16.msra.mxu0 %v2717
        %2766 = vmatprep.subr.bf16.mxu0 0
        %2767 = vmatpush1.bf16.msra.mxu0 %v2716
        %2768 = vmatprep.subr.bf16.mxu0 0
        %2769 = vmatpush1.bf16.msra.mxu0 %v2715
        %2770 = vmatprep.subr.bf16.mxu0 0
        %2771 = vmatpush1.bf16.msra.mxu0 %v2714
        %2772 = vmatprep.subr.bf16.mxu0 0
        %2773 = vmatpush1.bf16.msra.mxu0 %v2713
        %2774 = vmatprep.subr.bf16.mxu0 0
        %2775 = vmatpush1.bf16.msra.mxu0 %v2712
        %2776 = vmatprep.subr.bf16.mxu0 0
        %2777 = vmatpush2.bf16.msra.mxu0 %v2727
        %2778 = vmatprep.subr.bf16.mxu0 0
        %2779 = vmatpush2.bf16.msra.mxu0 %v2726
        %2780 = vmatprep.subr.bf16.mxu0 0
        %2781 = vmatpush2.bf16.msra.mxu0 %v2725
        %2782 = vmatprep.subr.bf16.mxu0 0
        %2783 = vmatpush2.bf16.msra.mxu0 %v2724
        %2784 = vmatprep.subr.bf16.mxu0 0
        %2785 = vmatpush2.bf16.msra.mxu0 %v2723
        %2786 = vmatprep.subr.bf16.mxu0 0
        %2787 = vmatpush2.bf16.msra.mxu0 %v2722
        %2788 = vmatprep.subr.bf16.mxu0 0
        %2789 = vmatpush2.bf16.msra.mxu0 %v2721
        %2790 = vmatprep.subr.bf16.mxu0 0
        %2791 = vmatpush2.bf16.msra.mxu0 %v2720
        %2792 = vmatprep.mubr.bf16.mxu0 %v2608
        %2793 = vmatmul.mubr.bf16.gmra.mxu0 %v2607
        %v2794 = vpop.f32.mrf.mxu0
        %v2795 = vadd.f32 %v2614, %v2794
        %v2796 = vpop.f32.mrf.mxu0
        %v2797 = vpop.f32.mrf.mxu0
        %v2798 = vadd.f32 %v2614, %v2797
        %v2799 = vpop.f32.mrf.mxu0
        %2800 = vdwg.mxu0
        %2801 = vmatprep.subr.bf16.mxu0 0
        %2802 = vmatpush1.bf16.msra.mxu0 %v2735
        %2803 = vmatprep.subr.bf16.mxu0 0
        %2804 = vmatpush1.bf16.msra.mxu0 %v2734
        %2805 = vmatprep.subr.bf16.mxu0 0
        %2806 = vmatpush1.bf16.msra.mxu0 %v2733
        %2807 = vmatprep.subr.bf16.mxu0 0
        %2808 = vmatpush1.bf16.msra.mxu0 %v2732
        %2809 = vmatprep.subr.bf16.mxu0 0
        %2810 = vmatpush1.bf16.msra.mxu0 %v2731
        %2811 = vmatprep.subr.bf16.mxu0 0
        %2812 = vmatpush1.bf16.msra.mxu0 %v2730
        %2813 = vmatprep.subr.bf16.mxu0 0
        %2814 = vmatpush1.bf16.msra.mxu0 %v2729
        %2815 = vmatprep.subr.bf16.mxu0 0
        %2816 = vmatpush1.bf16.msra.mxu0 %v2728
        %2817 = vmatprep.subr.bf16.mxu0 0
        %2818 = vmatpush2.bf16.msra.mxu0 0
        %2819 = vmatprep.subr.bf16.mxu0 0
        %2820 = vmatpush2.bf16.msra.mxu0 0
        %2821 = vmatprep.subr.bf16.mxu0 0
        %2822 = vmatpush2.bf16.msra.mxu0 0
        %2823 = vmatprep.subr.bf16.mxu0 0
        %2824 = vmatpush2.bf16.msra.mxu0 0
        %2825 = vmatprep.subr.bf16.mxu0 0
        %2826 = vmatpush2.bf16.msra.mxu0 0
        %2827 = vmatprep.subr.bf16.mxu0 0
        %2828 = vmatpush2.bf16.msra.mxu0 0
        %2829 = vmatprep.subr.bf16.mxu0 0
        %2830 = vmatpush2.bf16.msra.mxu0 0
        %2831 = vmatprep.subr.bf16.mxu0 0
        %2832 = vmatpush2.bf16.msra.mxu0 0
        %2833 = vmatprep.mubr.bf16.mxu0 0
        %2834 = vmatmul.mubr.bf16.gmra.mxu0 %v2609
        %v2835 = vpop.f32.mrf.mxu0
        %v2836 = vadd.f32 %v2795, %v2835
        %v2837 = vpop.f32.mrf.mxu0
        %v2838 = vpop.f32.mrf.mxu0
        %v2839 = vadd.f32 %v2798, %v2838
        %v2840 = vpop.f32.mrf.mxu0
        %2841 = vdwg.mxu0
        %v2842 = vld [vmem:[#allocation3 + $0x1] sm:$0xff]
        %v2843 = vld [vmem:[#allocation3 + $0x9] sm:$0xff]
        %v2844 = vadd.f32 %v2836, %v2842
        %v2845 = vadd.f32 %v2839, %v2843
        %v2846 = vmax.f32 %v2844, 0.0
        %v2847 = vmax.f32 %v2845, 0.0
        %2848 = vst [vmem:[%s347] sm:$0xff] %v2846
        %2849 = vst [vmem:[%s347 + $0x8] sm:$0xff] %v2847
        %p2850 = scmp.lt.s32.totalorder %s21, 1
        %s2851 = scalar_select %p2850, %s21, 1
        %s2852 = smul.addr %s2851, 2
        %s2853 = smul.addr %s2852, 8
        %s2854 = scalar_lea.vmem %s9, %s2853
        // Predicated region
        $region61: #{resblock4_fwd.1} parent=55 // pred_check
          %p2855 = pneg %p233
        $region62: #{resblock4_fwd.1} parent=55 // pred_check_branch
          %2857 = sbr.rel (%p2855) target = $region64
        $region63: #{resblock4_fwd.1} parent=55 // pred_region
          _
        $region64: #{resblock4_fwd.1} parent=55 // pred_fallthru
          _
      $region56: #{resblock4_fwd.1} parent=5 // pred_fallthru
        _
      %p2858 = scmp.le.s32.totalorder 2, %s16
      // Predicated region
      $region65: #{resblock4_fwd.1} parent=5 // pred_check
        %p2859 = pneg %p2858
      $region66: #{resblock4_fwd.1} parent=5 // pred_check_branch
        %2861 = sbr.rel (%p2859) target = $region68
      $region67: #{resblock4_fwd.1} parent=5 // pred_region
        %s2862 = ssub.s32 %s16, 2
        // Predicated region
        $region69: #{resblock4_fwd.1} parent=67 // pred_check
          %p2863 = pneg %p239
        $region70: #{resblock4_fwd.1} parent=67 // pred_check_branch
          %2865 = sbr.rel (%p2863) target = $region72
        $region71: #{resblock4_fwd.1} parent=67 // pred_region
          %p2866 = scmp.lt.s32.totalorder %s22, 1
          %s2867 = scalar_select %p2866, %s22, 1
          %s2868 = smul.addr %s2867, 2
          %s2869 = smul.addr %s2868, 8
          %s2870 = scalar_lea.vmem %s9, %s2869
        $region72: #{resblock4_fwd.1} parent=67 // pred_fallthru
          _
      $region68: #{resblock4_fwd.1} parent=5 // pred_fallthru
        _
    $region6: #{resblock4_fwd.1} parent=1 // loop_footer
      %s20 = sadd.s32 1, %s16
    $region7: #{resblock4_fwd.1} parent=1 // loop_footer_branch
      %15 = sbr.rel target = $region3
    $region8: #{resblock4_fwd.1} parent=1 // loop_exit
      _
    %2871 = vsyncpa [#allocation6], 1
    %s2872 = scalar_lea.sflag [#allocation6], 1
    %2873 = vsyncpa %s2872, 1

</llo_original>
